<compile_context>
chip_gen: v6e
topology: v6e:2x2x1
jax: 0.10.0
libtpu: 0.0.40
codegen_flags: <defaults>
</compile_context>

<pallas_src>
import jax
import jax.numpy as jnp
from jax.experimental import pallas as pl
from jax.experimental.pallas import tpu as pltpu

# Problem sizes (fixed by the module definition).
C = 352            # real channels
CP = 384           # channel dim padded to 3 * 128 lanes
H = W = 14         # input spatial
OH = OW = 7        # output spatial after stride-2 3x3 conv with pad 1
OWP = 8            # output width padded to one sublane tile (dummy col == 0)
NFLAT = OH * OWP   # 56 rows fed to the MXU (7 full sublane tiles)
EPS = 1e-5

# TODO(synk): BatchNorm2d running_mean/running_var (momentum) buffer updates are
# not emitted; the training-mode forward output does not depend on them.


def _fused_kernel(xp_ref, wdw_ref, gamma_ref, beta_ref, wpw_hbm, o_ref,
                  wpw_vmem, wpw_sem):
    """Fused ReLU'd-input depthwise 3x3/s2 conv + BatchNorm (batch stats) + 1x1 conv.

    xp_ref:    (6, 8, 8, CP) parity-plane input; plane p = hpar*3 + kw holds
               padded rows of parity hpar and padded cols iwp = 2*s + kw, so
               every depthwise tap is a contiguous (7, 8, CP) slice.  Sublane 7
               of every plane is zero (dummy output column source).
    wdw_ref:   (3, 3, CP)  depthwise weights (channel-padded, f32)
    gamma_ref: (1, CP)     BN scale (zero in padded lanes)
    beta_ref:  (1, CP)     BN shift (zero in padded lanes)
    wpw_hbm:   (CP, CP)    pointwise weights (Cin, Cout), bf16, left in HBM
    o_ref:     (NFLAT, CP) lane-dense output
    wpw_vmem:  (CP, CP)    bf16 VMEM scratch for the async weight copy
    wpw_sem:   DMA semaphore
    """
    # Kick off the 1x1-conv weight DMA immediately so it overlaps with the
    # depthwise conv + batch-norm work below.
    wpw_copy = pltpu.make_async_copy(wpw_hbm, wpw_vmem, wpw_sem)
    wpw_copy.start()

    # Depthwise 3x3 stride-2 conv: 9 contiguous taps, each an elementwise FMA.
    wdw = wdw_ref[...]                                         # (3, 3, CP)
    acc = None
    for kh in range(3):
        hpar, off = kh % 2, kh // 2
        for kw in range(3):
            tap = xp_ref[hpar * 3 + kw, off:off + OH, :, :]    # (OH, OWP, CP)
            term = tap * wdw[kh, kw, :]
            acc = term if acc is None else acc + term

    # Tile-aligned flatten: (7, 8, CP) -> (56, CP) is free (no relayout).
    flat = acc.reshape(NFLAT, CP)

    # BatchNorm2d (training mode): biased batch stats over the 49 valid pixels.
    # The dummy 8th column of every output row is exactly zero by construction,
    # so plain sums + (E[x^2] - mean^2) give the correct masked statistics.
    inv_n = jnp.float32(1.0 / (OH * OW))
    s1 = jnp.sum(flat, axis=0, keepdims=True)
    s2 = jnp.sum(flat * flat, axis=0, keepdims=True)
    mean = s1 * inv_n
    var = s2 * inv_n - mean * mean
    scale = jax.lax.rsqrt(var + EPS) * gamma_ref[...]
    shift = beta_ref[...] - mean * scale
    y = flat * scale + shift                                   # (56, CP) f32

    # 1x1 conv == (56, CP) x (CP, CP) matmul on the MXU: bf16 in, f32 accumulate.
    wpw_copy.wait()
    o_ref[...] = jnp.dot(y.astype(jnp.bfloat16), wpw_vmem[...],
                         preferred_element_type=jnp.float32)


def pack_params(w_dw, gamma, beta, w_pw):
    """One-time weight packing (call once, outside the per-step hot path).

    w_dw:  (C, 1, 3, 3) depthwise conv weights (PyTorch OIHW layout)
    gamma: (C,) BN weight     beta: (C,) BN bias
    w_pw:  (C, C) 1x1 conv weights, (Cout, Cin)
    """
    wdw_hwc = jnp.transpose(w_dw[:, 0], (1, 2, 0))                 # (3, 3, C)
    wdw_p = jnp.pad(wdw_hwc, ((0, 0), (0, 0), (0, CP - C)))
    gamma_p = jnp.pad(gamma, (0, CP - C)).reshape(1, CP)
    beta_p = jnp.pad(beta, (0, CP - C)).reshape(1, CP)
    wpw_p = jnp.pad(jnp.transpose(w_pw),                           # (Cin, Cout)
                    ((0, CP - C), (0, CP - C))).astype(jnp.bfloat16)
    return dict(wdw=wdw_p, gamma=gamma_p, beta=beta_p, wpw=wpw_p)


@jax.jit
def fused_forward(x_nchw, params):
    """x_nchw: (1, C, H, W) float32.  Returns (1, C, OH, OW) float32."""
    assert x_nchw.shape == (1, C, H, W), x_nchw.shape  # N == 1 per the module

    # ReLU + channel-last + zero halo + (h-parity, kw)-plane decimation, folded
    # into the single layout transform that had to exist anyway (NCHW -> lanes).
    x = jnp.maximum(x_nchw[0], 0.0)                                # (C, H, W)
    x = jnp.transpose(x, (1, 2, 0))                                # (H, W, C)
    x = jnp.pad(x, ((1, 1), (1, 1), (0, CP - C)))                  # (16, 16, CP)
    planes = []
    for hpar in (0, 1):
        rows = x[hpar::2]                                          # (8, 16, CP)
        for kw in range(3):
            cols = rows[:, kw:kw + 13:2, :]                        # (8, 7, CP)
            planes.append(jnp.pad(cols, ((0, 0), (0, 1), (0, 0))))  # dummy col 0
    x_packed = jnp.stack(planes)                                   # (6, 8, 8, CP)

    out_flat = pl.pallas_call(
        _fused_kernel,
        out_shape=jax.ShapeDtypeStruct((NFLAT, CP), jnp.float32),
        in_specs=[
            pl.BlockSpec(memory_space=pltpu.MemorySpace.VMEM),     # x_packed
            pl.BlockSpec(memory_space=pltpu.MemorySpace.VMEM),     # wdw
            pl.BlockSpec(memory_space=pltpu.MemorySpace.VMEM),     # gamma
            pl.BlockSpec(memory_space=pltpu.MemorySpace.VMEM),     # beta
            pl.BlockSpec(memory_space=pl.ANY),                     # wpw: manual DMA
        ],
        out_specs=pl.BlockSpec(memory_space=pltpu.MemorySpace.VMEM),
        scratch_shapes=[pltpu.VMEM((CP, CP), jnp.bfloat16),
                        pltpu.SemaphoreType.DMA],
        cost_estimate=pl.CostEstimate(flops=17_000_000, transcendentals=512,
                                      bytes_accessed=1_000_000),
    )(x_packed, params["wdw"], params["gamma"], params["beta"], params["wpw"])

    # Back to the module's NCHW contract (single fused slice + transpose).
    out = out_flat.reshape(OH, OWP, CP)[:, :OW, :C]                # (OH, OW, C)
    return jnp.transpose(out, (2, 0, 1))[None]                     # (1, C, OH, OW)


def _reference_forward(x_nchw, w_dw, gamma, beta, w_pw):
    """Pure-JAX reference (mirrors PyTorch training-mode forward), f32 throughout."""
    x = jnp.maximum(x_nchw, 0.0)
    y = jax.lax.conv_general_dilated(
        x, w_dw, window_strides=(2, 2), padding=((1, 1), (1, 1)),
        dimension_numbers=("NCHW", "OIHW", "NCHW"), feature_group_count=C)
    mean = jnp.mean(y, axis=(0, 2, 3), keepdims=True)
    var = jnp.mean(jnp.square(y - mean), axis=(0, 2, 3), keepdims=True)
    y = (y - mean) * jax.lax.rsqrt(var + EPS)
    y = y * gamma[None, :, None, None] + beta[None, :, None, None]
    return jax.lax.conv_general_dilated(
        y, w_pw[:, :, None, None], window_strides=(1, 1), padding=((0, 0), (0, 0)),
        dimension_numbers=("NCHW", "OIHW", "NCHW"))


if __name__ == "__main__":
    key = jax.random.PRNGKey(0)
    k_x, k_dw, k_g, k_b, k_pw = jax.random.split(key, 5)

    # Deterministic synthetic inputs / parameters (shapes match the PyTorch module).
    x = jax.random.normal(k_x, (1, C, H, W), jnp.float32)
    w_dw = jax.random.normal(k_dw, (C, 1, 3, 3), jnp.float32) * 0.1   # depthwise 3x3
    gamma = 1.0 + 0.1 * jax.random.normal(k_g, (C,), jnp.float32)     # BN weight
    beta = 0.1 * jax.random.normal(k_b, (C,), jnp.float32)            # BN bias
    w_pw = jax.random.normal(k_pw, (C, C), jnp.float32) * 0.05        # 1x1 conv (O,I)

    params = pack_params(w_dw, gamma, beta, w_pw)   # one-time, off the hot path
    out = jax.block_until_ready(fused_forward(x, params))

    ref = _reference_forward(x, w_dw, gamma, beta, w_pw)
    assert out.shape == (1, C, OH, OW), out.shape
    # Tolerance accounts for bf16 MXU inputs (f32 accumulation) in the 1x1 conv.
    if not jnp.allclose(out, ref, atol=1e-2, rtol=1e-2):
        err = jnp.max(jnp.abs(out - ref))
        raise AssertionError(f"Pallas kernel mismatch vs JAX reference (max err {err})")

    print("KERNEL_OK")
</pallas_src>

<mosaic_0001>
module attributes {stable_mosaic.version = 11 : i64} {
  func.func @_fused_kernel(%arg0: memref<6x8x8x384xf32, #tpu.memory_space<vmem>>, %arg1: memref<3x3x384xf32, #tpu.memory_space<vmem>>, %arg2: memref<1x384xf32, #tpu.memory_space<vmem>>, %arg3: memref<1x384xf32, #tpu.memory_space<vmem>>, %arg4: memref<384x384xbf16, #tpu.memory_space<any>>, %arg5: memref<56x384xf32, #tpu.memory_space<vmem>>, %arg6: memref<384x384xbf16, #tpu.memory_space<vmem>>, %arg7: memref<!tpu.dma_semaphore, #tpu.memory_space<semaphore_mem>>) attributes {dimension_semantics = [], scalar_prefetch = 0 : i64, scratch_operands = 2 : i64, tpu.core_type = #tpu.core_type<tc>} {
    tpu.enqueue_dma source(%arg4 : memref<384x384xbf16, #tpu.memory_space<any>>) target(%arg6 : memref<384x384xbf16, #tpu.memory_space<vmem>>) target_semaphore(%arg7 : memref<!tpu.dma_semaphore, #tpu.memory_space<semaphore_mem>>)
    %c0 = arith.constant 0 : index
    %c0_0 = arith.constant 0 : index
    %c0_1 = arith.constant 0 : index
    %0 = vector.load %arg1[%c0, %c0_0, %c0_1] : memref<3x3x384xf32, #tpu.memory_space<vmem>>, vector<3x3x384xf32>
    %c0_2 = arith.constant 0 : index
    %c0_3 = arith.constant 0 : index
    %c0_4 = arith.constant 0 : index
    %c0_5 = arith.constant 0 : index
    %1 = vector.load %arg0[%c0_2, %c0_3, %c0_4, %c0_5] : memref<6x8x8x384xf32, #tpu.memory_space<vmem>>, vector<1x7x8x384xf32>
    %2 = vector.shape_cast %1 : vector<1x7x8x384xf32> to vector<7x8x384xf32>
    %3 = vector.extract_strided_slice %0 {offsets = [0, 0, 0], sizes = [1, 1, 384], strides = [1, 1, 1]} : vector<3x3x384xf32> to vector<1x1x384xf32>
    %4 = vector.shape_cast %3 : vector<1x1x384xf32> to vector<384xf32>
    %5 = vector.shape_cast %4 : vector<384xf32> to vector<1x1x384xf32>
    %6 = vector.broadcast %5 : vector<1x1x384xf32> to vector<7x8x384xf32>
    %7 = arith.mulf %2, %6 : vector<7x8x384xf32>
    %c1 = arith.constant 1 : index
    %c0_6 = arith.constant 0 : index
    %c0_7 = arith.constant 0 : index
    %c0_8 = arith.constant 0 : index
    %8 = vector.load %arg0[%c1, %c0_6, %c0_7, %c0_8] : memref<6x8x8x384xf32, #tpu.memory_space<vmem>>, vector<1x7x8x384xf32>
    %9 = vector.shape_cast %8 : vector<1x7x8x384xf32> to vector<7x8x384xf32>
    %10 = vector.extract_strided_slice %0 {offsets = [0, 1, 0], sizes = [1, 1, 384], strides = [1, 1, 1]} : vector<3x3x384xf32> to vector<1x1x384xf32>
    %11 = vector.shape_cast %10 : vector<1x1x384xf32> to vector<384xf32>
    %12 = vector.shape_cast %11 : vector<384xf32> to vector<1x1x384xf32>
    %13 = vector.broadcast %12 : vector<1x1x384xf32> to vector<7x8x384xf32>
    %14 = arith.mulf %9, %13 : vector<7x8x384xf32>
    %15 = arith.addf %7, %14 : vector<7x8x384xf32>
    %c2 = arith.constant 2 : index
    %c0_9 = arith.constant 0 : index
    %c0_10 = arith.constant 0 : index
    %c0_11 = arith.constant 0 : index
    %16 = vector.load %arg0[%c2, %c0_9, %c0_10, %c0_11] : memref<6x8x8x384xf32, #tpu.memory_space<vmem>>, vector<1x7x8x384xf32>
    %17 = vector.shape_cast %16 : vector<1x7x8x384xf32> to vector<7x8x384xf32>
    %18 = vector.extract_strided_slice %0 {offsets = [0, 2, 0], sizes = [1, 1, 384], strides = [1, 1, 1]} : vector<3x3x384xf32> to vector<1x1x384xf32>
    %19 = vector.shape_cast %18 : vector<1x1x384xf32> to vector<384xf32>
    %20 = vector.shape_cast %19 : vector<384xf32> to vector<1x1x384xf32>
    %21 = vector.broadcast %20 : vector<1x1x384xf32> to vector<7x8x384xf32>
    %22 = arith.mulf %17, %21 : vector<7x8x384xf32>
    %23 = arith.addf %15, %22 : vector<7x8x384xf32>
    %c3 = arith.constant 3 : index
    %c0_12 = arith.constant 0 : index
    %c0_13 = arith.constant 0 : index
    %c0_14 = arith.constant 0 : index
    %24 = vector.load %arg0[%c3, %c0_12, %c0_13, %c0_14] : memref<6x8x8x384xf32, #tpu.memory_space<vmem>>, vector<1x7x8x384xf32>
    %25 = vector.shape_cast %24 : vector<1x7x8x384xf32> to vector<7x8x384xf32>
    %26 = vector.extract_strided_slice %0 {offsets = [1, 0, 0], sizes = [1, 1, 384], strides = [1, 1, 1]} : vector<3x3x384xf32> to vector<1x1x384xf32>
    %27 = vector.shape_cast %26 : vector<1x1x384xf32> to vector<384xf32>
    %28 = vector.shape_cast %27 : vector<384xf32> to vector<1x1x384xf32>
    %29 = vector.broadcast %28 : vector<1x1x384xf32> to vector<7x8x384xf32>
    %30 = arith.mulf %25, %29 : vector<7x8x384xf32>
    %31 = arith.addf %23, %30 : vector<7x8x384xf32>
    %c4 = arith.constant 4 : index
    %c0_15 = arith.constant 0 : index
    %c0_16 = arith.constant 0 : index
    %c0_17 = arith.constant 0 : index
    %32 = vector.load %arg0[%c4, %c0_15, %c0_16, %c0_17] : memref<6x8x8x384xf32, #tpu.memory_space<vmem>>, vector<1x7x8x384xf32>
    %33 = vector.shape_cast %32 : vector<1x7x8x384xf32> to vector<7x8x384xf32>
    %34 = vector.extract_strided_slice %0 {offsets = [1, 1, 0], sizes = [1, 1, 384], strides = [1, 1, 1]} : vector<3x3x384xf32> to vector<1x1x384xf32>
    %35 = vector.shape_cast %34 : vector<1x1x384xf32> to vector<384xf32>
    %36 = vector.shape_cast %35 : vector<384xf32> to vector<1x1x384xf32>
    %37 = vector.broadcast %36 : vector<1x1x384xf32> to vector<7x8x384xf32>
    %38 = arith.mulf %33, %37 : vector<7x8x384xf32>
    %39 = arith.addf %31, %38 : vector<7x8x384xf32>
    %c5 = arith.constant 5 : index
    %c0_18 = arith.constant 0 : index
    %c0_19 = arith.constant 0 : index
    %c0_20 = arith.constant 0 : index
    %40 = vector.load %arg0[%c5, %c0_18, %c0_19, %c0_20] : memref<6x8x8x384xf32, #tpu.memory_space<vmem>>, vector<1x7x8x384xf32>
    %41 = vector.shape_cast %40 : vector<1x7x8x384xf32> to vector<7x8x384xf32>
    %42 = vector.extract_strided_slice %0 {offsets = [1, 2, 0], sizes = [1, 1, 384], strides = [1, 1, 1]} : vector<3x3x384xf32> to vector<1x1x384xf32>
    %43 = vector.shape_cast %42 : vector<1x1x384xf32> to vector<384xf32>
    %44 = vector.shape_cast %43 : vector<384xf32> to vector<1x1x384xf32>
    %45 = vector.broadcast %44 : vector<1x1x384xf32> to vector<7x8x384xf32>
    %46 = arith.mulf %41, %45 : vector<7x8x384xf32>
    %47 = arith.addf %39, %46 : vector<7x8x384xf32>
    %c0_21 = arith.constant 0 : index
    %c1_22 = arith.constant 1 : index
    %c0_23 = arith.constant 0 : index
    %c0_24 = arith.constant 0 : index
    %48 = vector.load %arg0[%c0_21, %c1_22, %c0_23, %c0_24] : memref<6x8x8x384xf32, #tpu.memory_space<vmem>>, vector<1x7x8x384xf32>
    %49 = vector.shape_cast %48 : vector<1x7x8x384xf32> to vector<7x8x384xf32>
    %50 = vector.extract_strided_slice %0 {offsets = [2, 0, 0], sizes = [1, 1, 384], strides = [1, 1, 1]} : vector<3x3x384xf32> to vector<1x1x384xf32>
    %51 = vector.shape_cast %50 : vector<1x1x384xf32> to vector<384xf32>
    %52 = vector.shape_cast %51 : vector<384xf32> to vector<1x1x384xf32>
    %53 = vector.broadcast %52 : vector<1x1x384xf32> to vector<7x8x384xf32>
    %54 = arith.mulf %49, %53 : vector<7x8x384xf32>
    %55 = arith.addf %47, %54 : vector<7x8x384xf32>
    %c1_25 = arith.constant 1 : index
    %c1_26 = arith.constant 1 : index
    %c0_27 = arith.constant 0 : index
    %c0_28 = arith.constant 0 : index
    %56 = vector.load %arg0[%c1_25, %c1_26, %c0_27, %c0_28] : memref<6x8x8x384xf32, #tpu.memory_space<vmem>>, vector<1x7x8x384xf32>
    %57 = vector.shape_cast %56 : vector<1x7x8x384xf32> to vector<7x8x384xf32>
    %58 = vector.extract_strided_slice %0 {offsets = [2, 1, 0], sizes = [1, 1, 384], strides = [1, 1, 1]} : vector<3x3x384xf32> to vector<1x1x384xf32>
    %59 = vector.shape_cast %58 : vector<1x1x384xf32> to vector<384xf32>
    %60 = vector.shape_cast %59 : vector<384xf32> to vector<1x1x384xf32>
    %61 = vector.broadcast %60 : vector<1x1x384xf32> to vector<7x8x384xf32>
    %62 = arith.mulf %57, %61 : vector<7x8x384xf32>
    %63 = arith.addf %55, %62 : vector<7x8x384xf32>
    %c2_29 = arith.constant 2 : index
    %c1_30 = arith.constant 1 : index
    %c0_31 = arith.constant 0 : index
    %c0_32 = arith.constant 0 : index
    %64 = vector.load %arg0[%c2_29, %c1_30, %c0_31, %c0_32] : memref<6x8x8x384xf32, #tpu.memory_space<vmem>>, vector<1x7x8x384xf32>
    %65 = vector.shape_cast %64 : vector<1x7x8x384xf32> to vector<7x8x384xf32>
    %66 = vector.extract_strided_slice %0 {offsets = [2, 2, 0], sizes = [1, 1, 384], strides = [1, 1, 1]} : vector<3x3x384xf32> to vector<1x1x384xf32>
    %67 = vector.shape_cast %66 : vector<1x1x384xf32> to vector<384xf32>
    %68 = vector.shape_cast %67 : vector<384xf32> to vector<1x1x384xf32>
    %69 = vector.broadcast %68 : vector<1x1x384xf32> to vector<7x8x384xf32>
    %70 = arith.mulf %65, %69 : vector<7x8x384xf32>
    %71 = arith.addf %63, %70 : vector<7x8x384xf32>
    %72 = vector.shape_cast %71 : vector<7x8x384xf32> to vector<56x384xf32>
    %cst = arith.constant dense<0.000000e+00> : vector<384xf32>
    %73 = vector.multi_reduction <add>, %72, %cst [0] : vector<56x384xf32> to vector<384xf32>
    %74 = vector.shape_cast %73 : vector<384xf32> to vector<1x384xf32>
    %75 = arith.mulf %72, %72 : vector<56x384xf32>
    %cst_33 = arith.constant dense<0.000000e+00> : vector<384xf32>
    %76 = vector.multi_reduction <add>, %75, %cst_33 [0] : vector<56x384xf32> to vector<384xf32>
    %77 = vector.shape_cast %76 : vector<384xf32> to vector<1x384xf32>
    %cst_34 = arith.constant 0.0204081628 : f32
    %78 = vector.broadcast %cst_34 : f32 to vector<1x384xf32>
    %79 = arith.mulf %74, %78 : vector<1x384xf32>
    %cst_35 = arith.constant 0.0204081628 : f32
    %80 = vector.broadcast %cst_35 : f32 to vector<1x384xf32>
    %81 = arith.mulf %77, %80 : vector<1x384xf32>
    %82 = arith.mulf %79, %79 : vector<1x384xf32>
    %83 = arith.subf %81, %82 : vector<1x384xf32>
    %cst_36 = arith.constant 9.99999974E-6 : f32
    %84 = vector.broadcast %cst_36 : f32 to vector<1x384xf32>
    %85 = arith.addf %83, %84 : vector<1x384xf32>
    %86 = math.rsqrt %85 : vector<1x384xf32>
    %c0_37 = arith.constant 0 : index
    %c0_38 = arith.constant 0 : index
    %87 = vector.load %arg2[%c0_37, %c0_38] : memref<1x384xf32, #tpu.memory_space<vmem>>, vector<1x384xf32>
    %88 = arith.mulf %86, %87 : vector<1x384xf32>
    %c0_39 = arith.constant 0 : index
    %c0_40 = arith.constant 0 : index
    %89 = vector.load %arg3[%c0_39, %c0_40] : memref<1x384xf32, #tpu.memory_space<vmem>>, vector<1x384xf32>
    %90 = arith.mulf %79, %88 : vector<1x384xf32>
    %91 = arith.subf %89, %90 : vector<1x384xf32>
    %92 = vector.broadcast %88 : vector<1x384xf32> to vector<56x384xf32>
    %93 = arith.mulf %72, %92 : vector<56x384xf32>
    %94 = vector.broadcast %91 : vector<1x384xf32> to vector<56x384xf32>
    %95 = arith.addf %93, %94 : vector<56x384xf32>
    tpu.wait_dma2 semaphore(%arg7 : memref<!tpu.dma_semaphore, #tpu.memory_space<semaphore_mem>>) src(%arg4 : memref<384x384xbf16, #tpu.memory_space<any>>) dst(%arg6 : memref<384x384xbf16, #tpu.memory_space<vmem>>)
    %96 = arith.truncf %95 : vector<56x384xf32> to vector<56x384xbf16>
    %c0_41 = arith.constant 0 : index
    %c0_42 = arith.constant 0 : index
    %97 = vector.load %arg6[%c0_41, %c0_42] : memref<384x384xbf16, #tpu.memory_space<vmem>>, vector<384x384xbf16>
    %cst_43 = arith.constant dense<0.000000e+00> : vector<56x384xf32>
    %98 = tpu.matmul %96, %97, %cst_43 {dimension_numbers = #tpu.dot_dimension_numbers<[1], [0], [0], [1], [0, 0, 1, 1], [], []>} : vector<56x384xbf16>, vector<384x384xbf16>, vector<56x384xf32> -> vector<56x384xf32>
    %c0_44 = arith.constant 0 : index
    %c0_45 = arith.constant 0 : index
    %99 = vector.load %arg5[%c0_44, %c0_45] : memref<56x384xf32, #tpu.memory_space<vmem>>, vector<56x384xf32>
    tpu.vector_store %arg5[%c0_44, %c0_45], %98 {strides = array<i32>} : memref<56x384xf32, #tpu.memory_space<vmem>>, vector<56x384xf32>,
    return
  }
}

</mosaic_0001>

<llo_original>
// kernel: fused_forward.1
$region0: #{fused_forward.1}
  #allocation0 [shape = 'u32[]', space=smem, size = 0x4, offset = 0x4, fixed_abs, tag = 'smem constant byte address 0x4 - core index']
  #allocation1 [shape = 'u32[144,128]{1,0:T(1,128)}', space=vmem, size = 0x12000, scoped, tag = 'internal scratch']
  #allocation2 [shape = 'bf16[384,384]{1,0:T(8,128)(2,1)}', space=vmem, size = 0x48000, scoped, tag = 'scratch operand']
  #allocation3 [shape = 's32[1]{0}', space=sflag, size = 0x4, scoped, tag = 'scratch operand']
  #allocation4 [shape = 's32[]', space=sflag, size = 0x4, offset = 0, fixed_abs, tag = 'sflag constant byte address 0x0 - dummy sync flag']
  %s0 = inlined_call_operand.vmem [shape: f32[6,8,8,384], index: 0, kind: input, shape index: {}]
  %s1 = inlined_call_operand.vmem [shape: f32[3,3,384], index: 1, kind: input, shape index: {}]
  %s2 = inlined_call_operand.vmem [shape: f32[1,384], index: 2, kind: input, shape index: {}]
  %s3 = inlined_call_operand.vmem [shape: f32[1,384], index: 3, kind: input, shape index: {}]
  %s4 = inlined_call_operand.vmem [shape: bf16[384,384], index: 4, kind: input, shape index: {}]
  %s5 = inlined_call_operand.vmem [shape: f32[56,384], index: 5, kind: output, shape index: {}]
  %s6 = sld [smem:[#allocation0]]
  $region60: #{fused_forward.1} parent=0
    _
  %s8 = ssub.s32 1, %s6
  %s9 = scalar_select 0, %s8, %s6
  // Predicated region
  $region2: #{fused_forward.1} parent=0 // pred_check
    _
  $region3: #{fused_forward.1} parent=0 // pred_check_branch
    %11 = sbr.rel (0) target = $region5
  $region4: #{fused_forward.1} parent=0 // pred_region
    _
  $region5: #{fused_forward.1} parent=0 // pred_fallthru
    _
  // Predicated region
  $region6: #{fused_forward.1} parent=0 // pred_check
    _
  $region7: #{fused_forward.1} parent=0 // pred_check_branch
    %13 = sbr.rel (0) target = $region9
  $region8: #{fused_forward.1} parent=0 // pred_region
    _
  $region9: #{fused_forward.1} parent=0 // pred_fallthru
    _
  // Predicated region
  $region10: #{fused_forward.1} parent=0 // pred_check
    _
  $region11: #{fused_forward.1} parent=0 // pred_check_branch
    %15 = sbr.rel (0) target = $region13
  $region12: #{fused_forward.1} parent=0 // pred_region
    _
  $region13: #{fused_forward.1} parent=0 // pred_fallthru
    _
  // Predicated region
  $region14: #{fused_forward.1} parent=0 // pred_check
    _
  $region15: #{fused_forward.1} parent=0 // pred_check_branch
    %17 = sbr.rel (0) target = $region17
  $region16: #{fused_forward.1} parent=0 // pred_region
    _
  $region17: #{fused_forward.1} parent=0 // pred_fallthru
    _
  %p20 = scmp.lt.u32.totalorder 576, 8
  %p21 = pneg %p20
  // Predicated region
  $region18: #{fused_forward.1} parent=0 // pred_check
    _
  $region19: #{fused_forward.1} parent=0 // pred_check_branch
    %23 = sbr.rel (%p20) target = $region21
  $region20: #{fused_forward.1} parent=0 // pred_region
    %s39 = sand.u32 576, 7
    %p40 = scmp.eq.s32.totalorder %s39, 0
    // Predicated region
    $region33: #{fused_forward.1} parent=20 // pred_check
      %p41 = pneg %p40
    $region34: #{fused_forward.1} parent=20 // pred_check_branch
      %43 = sbr.rel (%p41) target = $region36
    $region35: #{fused_forward.1} parent=20 // pred_region
      loop: start=0, step=1, limit=1
      $region37: #{fused_forward.1} parent=35 // loop_pre_header
        _
      $region38: #{fused_forward.1} parent=35 // loop_header
        %s45 = sphi 0, %s49
        %p46 = scmp.ge.s32.totalorder %s45, 1
        %s50 = sphi %s4, %s4
        %s51 = sphi [#allocation2], [#allocation2]
      $region39: #{fused_forward.1} parent=35 // loop_header_branch
        %48 = sbr.rel (%p46) target = $region43
      $region40: #{fused_forward.1} parent=35 // loop_body
        %v52 = vld [vmem:[%s50] sm:$0xff]
        %53 = vst [vmem:[%s51] sm:$0xff] %v52
        %v54 = vld [vmem:[%s50 + $0x8] sm:$0xff]
        %55 = vst [vmem:[%s51 + $0x8] sm:$0xff] %v54
        %v56 = vld [vmem:[%s50 + $0x10] sm:$0xff]
        %57 = vst [vmem:[%s51 + $0x10] sm:$0xff] %v56
        %v58 = vld [vmem:[%s50 + $0x18] sm:$0xff]
        %59 = vst [vmem:[%s51 + $0x18] sm:$0xff] %v58
        %v60 = vld [vmem:[%s50 + $0x20] sm:$0xff]
        %61 = vst [vmem:[%s51 + $0x20] sm:$0xff] %v60
        %v62 = vld [vmem:[%s50 + $0x28] sm:$0xff]
        %63 = vst [vmem:[%s51 + $0x28] sm:$0xff] %v62
        %v64 = vld [vmem:[%s50 + $0x30] sm:$0xff]
        %65 = vst [vmem:[%s51 + $0x30] sm:$0xff] %v64
        %v66 = vld [vmem:[%s50 + $0x38] sm:$0xff]
        %67 = vst [vmem:[%s51 + $0x38] sm:$0xff] %v66
        %v68 = vld [vmem:[%s50 + $0x40] sm:$0xff]
        %69 = vst [vmem:[%s51 + $0x40] sm:$0xff] %v68
        %v70 = vld [vmem:[%s50 + $0x48] sm:$0xff]
        %71 = vst [vmem:[%s51 + $0x48] sm:$0xff] %v70
        %v72 = vld [vmem:[%s50 + $0x50] sm:$0xff]
        %73 = vst [vmem:[%s51 + $0x50] sm:$0xff] %v72
        %v74 = vld [vmem:[%s50 + $0x58] sm:$0xff]
        %75 = vst [vmem:[%s51 + $0x58] sm:$0xff] %v74
        %v76 = vld [vmem:[%s50 + $0x60] sm:$0xff]
        %77 = vst [vmem:[%s51 + $0x60] sm:$0xff] %v76
        %v78 = vld [vmem:[%s50 + $0x68] sm:$0xff]
        %79 = vst [vmem:[%s51 + $0x68] sm:$0xff] %v78
        %v80 = vld [vmem:[%s50 + $0x70] sm:$0xff]
        %81 = vst [vmem:[%s51 + $0x70] sm:$0xff] %v80
        %v82 = vld [vmem:[%s50 + $0x78] sm:$0xff]
        %83 = vst [vmem:[%s51 + $0x78] sm:$0xff] %v82
        %v84 = vld [vmem:[%s50 + $0x80] sm:$0xff]
        %85 = vst [vmem:[%s51 + $0x80] sm:$0xff] %v84
        %v86 = vld [vmem:[%s50 + $0x88] sm:$0xff]
        %87 = vst [vmem:[%s51 + $0x88] sm:$0xff] %v86
        %v88 = vld [vmem:[%s50 + $0x90] sm:$0xff]
        %89 = vst [vmem:[%s51 + $0x90] sm:$0xff] %v88
        %v90 = vld [vmem:[%s50 + $0x98] sm:$0xff]
        %91 = vst [vmem:[%s51 + $0x98] sm:$0xff] %v90
        %v92 = vld [vmem:[%s50 + $0xa0] sm:$0xff]
        %93 = vst [vmem:[%s51 + $0xa0] sm:$0xff] %v92
        %v94 = vld [vmem:[%s50 + $0xa8] sm:$0xff]
        %95 = vst [vmem:[%s51 + $0xa8] sm:$0xff] %v94
        %v96 = vld [vmem:[%s50 + $0xb0] sm:$0xff]
        %97 = vst [vmem:[%s51 + $0xb0] sm:$0xff] %v96
        %v98 = vld [vmem:[%s50 + $0xb8] sm:$0xff]
        %99 = vst [vmem:[%s51 + $0xb8] sm:$0xff] %v98
        %v100 = vld [vmem:[%s50 + $0xc0] sm:$0xff]
        %101 = vst [vmem:[%s51 + $0xc0] sm:$0xff] %v100
        %v102 = vld [vmem:[%s50 + $0xc8] sm:$0xff]
        %103 = vst [vmem:[%s51 + $0xc8] sm:$0xff] %v102
        %v104 = vld [vmem:[%s50 + $0xd0] sm:$0xff]
        %105 = vst [vmem:[%s51 + $0xd0] sm:$0xff] %v104
        %v106 = vld [vmem:[%s50 + $0xd8] sm:$0xff]
        %107 = vst [vmem:[%s51 + $0xd8] sm:$0xff] %v106
        %v108 = vld [vmem:[%s50 + $0xe0] sm:$0xff]
        %109 = vst [vmem:[%s51 + $0xe0] sm:$0xff] %v108
        %v110 = vld [vmem:[%s50 + $0xe8] sm:$0xff]
        %111 = vst [vmem:[%s51 + $0xe8] sm:$0xff] %v110
        %v112 = vld [vmem:[%s50 + $0xf0] sm:$0xff]
        %113 = vst [vmem:[%s51 + $0xf0] sm:$0xff] %v112
        %v114 = vld [vmem:[%s50 + $0xf8] sm:$0xff]
        %115 = vst [vmem:[%s51 + $0xf8] sm:$0xff] %v114
        %v116 = vld [vmem:[%s50 + $0x100] sm:$0xff]
        %117 = vst [vmem:[%s51 + $0x100] sm:$0xff] %v116
        %v118 = vld [vmem:[%s50 + $0x108] sm:$0xff]
        %119 = vst [vmem:[%s51 + $0x108] sm:$0xff] %v118
        %v120 = vld [vmem:[%s50 + $0x110] sm:$0xff]
        %121 = vst [vmem:[%s51 + $0x110] sm:$0xff] %v120
        %v122 = vld [vmem:[%s50 + $0x118] sm:$0xff]
        %123 = vst [vmem:[%s51 + $0x118] sm:$0xff] %v122
        %v124 = vld [vmem:[%s50 + $0x120] sm:$0xff]
        %125 = vst [vmem:[%s51 + $0x120] sm:$0xff] %v124
        %v126 = vld [vmem:[%s50 + $0x128] sm:$0xff]
        %127 = vst [vmem:[%s51 + $0x128] sm:$0xff] %v126
        %v128 = vld [vmem:[%s50 + $0x130] sm:$0xff]
        %129 = vst [vmem:[%s51 + $0x130] sm:$0xff] %v128
        %v130 = vld [vmem:[%s50 + $0x138] sm:$0xff]
        %131 = vst [vmem:[%s51 + $0x138] sm:$0xff] %v130
        %v132 = vld [vmem:[%s50 + $0x140] sm:$0xff]
        %133 = vst [vmem:[%s51 + $0x140] sm:$0xff] %v132
        %v134 = vld [vmem:[%s50 + $0x148] sm:$0xff]
        %135 = vst [vmem:[%s51 + $0x148] sm:$0xff] %v134
        %v136 = vld [vmem:[%s50 + $0x150] sm:$0xff]
        %137 = vst [vmem:[%s51 + $0x150] sm:$0xff] %v136
        %v138 = vld [vmem:[%s50 + $0x158] sm:$0xff]
        %139 = vst [vmem:[%s51 + $0x158] sm:$0xff] %v138
        %v140 = vld [vmem:[%s50 + $0x160] sm:$0xff]
        %141 = vst [vmem:[%s51 + $0x160] sm:$0xff] %v140
        %v142 = vld [vmem:[%s50 + $0x168] sm:$0xff]
        %143 = vst [vmem:[%s51 + $0x168] sm:$0xff] %v142
        %v144 = vld [vmem:[%s50 + $0x170] sm:$0xff]
        %145 = vst [vmem:[%s51 + $0x170] sm:$0xff] %v144
        %v146 = vld [vmem:[%s50 + $0x178] sm:$0xff]
        %147 = vst [vmem:[%s51 + $0x178] sm:$0xff] %v146
        %v148 = vld [vmem:[%s50 + $0x180] sm:$0xff]
        %149 = vst [vmem:[%s51 + $0x180] sm:$0xff] %v148
        %v150 = vld [vmem:[%s50 + $0x188] sm:$0xff]
        %151 = vst [vmem:[%s51 + $0x188] sm:$0xff] %v150
        %v152 = vld [vmem:[%s50 + $0x190] sm:$0xff]
        %153 = vst [vmem:[%s51 + $0x190] sm:$0xff] %v152
        %v154 = vld [vmem:[%s50 + $0x198] sm:$0xff]
        %155 = vst [vmem:[%s51 + $0x198] sm:$0xff] %v154
        %v156 = vld [vmem:[%s50 + $0x1a0] sm:$0xff]
        %157 = vst [vmem:[%s51 + $0x1a0] sm:$0xff] %v156
        %v158 = vld [vmem:[%s50 + $0x1a8] sm:$0xff]
        %159 = vst [vmem:[%s51 + $0x1a8] sm:$0xff] %v158
        %v160 = vld [vmem:[%s50 + $0x1b0] sm:$0xff]
        %161 = vst [vmem:[%s51 + $0x1b0] sm:$0xff] %v160
        %v162 = vld [vmem:[%s50 + $0x1b8] sm:$0xff]
        %163 = vst [vmem:[%s51 + $0x1b8] sm:$0xff] %v162
        %v164 = vld [vmem:[%s50 + $0x1c0] sm:$0xff]
        %165 = vst [vmem:[%s51 + $0x1c0] sm:$0xff] %v164
        %v166 = vld [vmem:[%s50 + $0x1c8] sm:$0xff]
        %167 = vst [vmem:[%s51 + $0x1c8] sm:$0xff] %v166
        %v168 = vld [vmem:[%s50 + $0x1d0] sm:$0xff]
        %169 = vst [vmem:[%s51 + $0x1d0] sm:$0xff] %v168
        %v170 = vld [vmem:[%s50 + $0x1d8] sm:$0xff]
        %171 = vst [vmem:[%s51 + $0x1d8] sm:$0xff] %v170
        %v172 = vld [vmem:[%s50 + $0x1e0] sm:$0xff]
        %173 = vst [vmem:[%s51 + $0x1e0] sm:$0xff] %v172
        %v174 = vld [vmem:[%s50 + $0x1e8] sm:$0xff]
        %175 = vst [vmem:[%s51 + $0x1e8] sm:$0xff] %v174
        %v176 = vld [vmem:[%s50 + $0x1f0] sm:$0xff]
        %177 = vst [vmem:[%s51 + $0x1f0] sm:$0xff] %v176
        %v178 = vld [vmem:[%s50 + $0x1f8] sm:$0xff]
        %179 = vst [vmem:[%s51 + $0x1f8] sm:$0xff] %v178
        %v180 = vld [vmem:[%s50 + $0x200] sm:$0xff]
        %181 = vst [vmem:[%s51 + $0x200] sm:$0xff] %v180
        %v182 = vld [vmem:[%s50 + $0x208] sm:$0xff]
        %183 = vst [vmem:[%s51 + $0x208] sm:$0xff] %v182
        %v184 = vld [vmem:[%s50 + $0x210] sm:$0xff]
        %185 = vst [vmem:[%s51 + $0x210] sm:$0xff] %v184
        %v186 = vld [vmem:[%s50 + $0x218] sm:$0xff]
        %187 = vst [vmem:[%s51 + $0x218] sm:$0xff] %v186
        %v188 = vld [vmem:[%s50 + $0x220] sm:$0xff]
        %189 = vst [vmem:[%s51 + $0x220] sm:$0xff] %v188
        %v190 = vld [vmem:[%s50 + $0x228] sm:$0xff]
        %191 = vst [vmem:[%s51 + $0x228] sm:$0xff] %v190
        %v192 = vld [vmem:[%s50 + $0x230] sm:$0xff]
        %193 = vst [vmem:[%s51 + $0x230] sm:$0xff] %v192
        %v194 = vld [vmem:[%s50 + $0x238] sm:$0xff]
        %195 = vst [vmem:[%s51 + $0x238] sm:$0xff] %v194
      $region41: #{fused_forward.1} parent=35 // loop_footer
        %s49 = sadd.s32 1, %s45
      $region42: #{fused_forward.1} parent=35 // loop_footer_branch
        %44 = sbr.rel target = $region38
      $region43: #{fused_forward.1} parent=35 // loop_exit
        _
    $region36: #{fused_forward.1} parent=20 // pred_fallthru
      _
    %p196 = pneg %p40
    // Predicated region
    $region44: #{fused_forward.1} parent=20 // pred_check
      _
    $region45: #{fused_forward.1} parent=20 // pred_check_branch
      %198 = sbr.rel (%p40) target = $region47
    $region46: #{fused_forward.1} parent=20 // pred_region
      %s199 = sand.u32 576, 7
    $region47: #{fused_forward.1} parent=20 // pred_fallthru
      _
  $region21: #{fused_forward.1} parent=0 // pred_fallthru
    _
  // Predicated region
  $region22: #{fused_forward.1} parent=0 // pred_check
    %p24 = pneg %p20
  $region23: #{fused_forward.1} parent=0 // pred_check_branch
    %26 = sbr.rel (%p24) target = $region25
  $region24: #{fused_forward.1} parent=0 // pred_region
    %s27 = sshll.u32 1, 576
    %s28 = ssub.s32 %s27, 1
    loop: start=0, step=1, limit=1
    $region26: #{fused_forward.1} parent=24 // loop_pre_header
      _
    $region27: #{fused_forward.1} parent=24 // loop_header
      %s30 = sphi 0, %s34
      %p31 = scmp.ge.s32.totalorder %s30, 1
      %s35 = sphi %s4, %s4
      %s36 = sphi [#allocation2], [#allocation2]
    $region28: #{fused_forward.1} parent=24 // loop_header_branch
      %33 = sbr.rel (%p31) target = $region32
    $region29: #{fused_forward.1} parent=24 // loop_body
      %v37 = vld [vmem:[%s35] sm:%s28]
      %38 = vst [vmem:[%s36] sm:%s28] %v37
    $region30: #{fused_forward.1} parent=24 // loop_footer
      %s34 = sadd.s32 1, %s30
    $region31: #{fused_forward.1} parent=24 // loop_footer_branch
      %29 = sbr.rel target = $region27
    $region32: #{fused_forward.1} parent=24 // loop_exit
      _
  $region25: #{fused_forward.1} parent=0 // pred_fallthru
    _
  // Predicated region
  $region48: #{fused_forward.1} parent=0 // pred_check
    _
  $region49: #{fused_forward.1} parent=0 // pred_check_branch
    %202 = sbr.rel (0) target = $region51
  $region50: #{fused_forward.1} parent=0 // pred_region
    %203 = vsyncadd [#allocation3], 9216
  $region51: #{fused_forward.1} parent=0 // pred_fallthru
    _
  %v204 = vld [vmem:[%s1] sm:$0x77]
  %v205 = vld [vmem:[%s1 + $0x8] sm:$0x7]
  %v206 = vld [vmem:[%s1 + $0xc] sm:$0x77]
  %v207 = vld [vmem:[%s1 + $0x14] sm:$0x7]
  %v208 = vld [vmem:[%s1 + $0x18] sm:$0x77]
  %v209 = vld [vmem:[%s1 + $0x20] sm:$0x7]
  %v210 = vld [vmem:[%s0] sm:$0xff]
  %v211 = vld [vmem:[%s0 + $0x8] sm:$0xff]
  %v212 = vld [vmem:[%s0 + $0x10] sm:$0xff]
  %v213 = vld [vmem:[%s0 + $0x18] sm:$0xff]
  %v214 = vld [vmem:[%s0 + $0x20] sm:$0xff]
  %v215 = vld [vmem:[%s0 + $0x28] sm:$0xff]
  %v216 = vld [vmem:[%s0 + $0x30] sm:$0xff]
  %v217 = vld [vmem:[%s0 + $0x38] sm:$0xff]
  %v218 = vld [vmem:[%s0 + $0x40] sm:$0xff]
  %v219 = vld [vmem:[%s0 + $0x48] sm:$0xff]
  %v220 = vld [vmem:[%s0 + $0x50] sm:$0xff]
  %v221 = vld [vmem:[%s0 + $0x58] sm:$0xff]
  %v222 = vld [vmem:[%s0 + $0x60] sm:$0xff]
  %v223 = vld [vmem:[%s0 + $0x68] sm:$0xff]
  %v224 = vld [vmem:[%s0 + $0x70] sm:$0xff]
  %v225 = vld [vmem:[%s0 + $0x78] sm:$0xff]
  %v226 = vld [vmem:[%s0 + $0x80] sm:$0xff]
  %v227 = vld [vmem:[%s0 + $0x88] sm:$0xff]
  %v228 = vld [vmem:[%s0 + $0x90] sm:$0xff]
  %v229 = vld [vmem:[%s0 + $0x98] sm:$0xff]
  %v230 = vld [vmem:[%s0 + $0xa0] sm:$0xff]
  %v233 = vlaneseq
  %v234 = vshrl.u32 %v233, 7
  %v235 = vsub.s32 0, %v234
  %v236 = vrot.slane %v204, %v235
  %v237 = vlaneseq
  %v238 = vshrl.u32 %v237, 7
  %v239 = vsub.s32 4, %v238
  %v240 = vrot.slane %v204, %v239
  %v241 = vlaneseq
  %v242 = vshrl.u32 %v241, 7
  %v243 = vsub.s32 0, %v242
  %v244 = vrot.slane %v205, %v243
  %v248 = vlaneseq
  %v249 = vshrl.u32 %v248, 7
  %v250 = vsub.s32 0, %v249
  %v251 = vrot.slane %v236, %v250
  %v252 = vlaneseq
  %v253 = vshrl.u32 %v252, 7
  %v254 = vsub.s32 0, %v253
  %v255 = vrot.slane %v240, %v254
  %v256 = vlaneseq
  %v257 = vshrl.u32 %v256, 7
  %v258 = vsub.s32 0, %v257
  %v259 = vrot.slane %v244, %v258
  %v260 = vmul.f32 %v210, %v251
  %v261 = vmul.f32 %v211, %v255
  %v262 = vmul.f32 %v212, %v259
  %v263 = vmul.f32 %v213, %v251
  %v264 = vmul.f32 %v214, %v255
  %v265 = vmul.f32 %v215, %v259
  %v266 = vmul.f32 %v216, %v251
  %v267 = vmul.f32 %v217, %v255
  %v268 = vmul.f32 %v218, %v259
  %v269 = vmul.f32 %v219, %v251
  %v270 = vmul.f32 %v220, %v255
  %v271 = vmul.f32 %v221, %v259
  %v272 = vmul.f32 %v222, %v251
  %v273 = vmul.f32 %v223, %v255
  %v274 = vmul.f32 %v224, %v259
  %v275 = vmul.f32 %v225, %v251
  %v276 = vmul.f32 %v226, %v255
  %v277 = vmul.f32 %v227, %v259
  %v278 = vmul.f32 %v228, %v251
  %v279 = vmul.f32 %v229, %v255
  %v280 = vmul.f32 %v230, %v259
  %s281 = scalar_lea.vmem %s0, 192
  %v282 = vld [vmem:[%s281] sm:$0xff]
  %v283 = vld [vmem:[%s281 + $0x8] sm:$0xff]
  %v284 = vld [vmem:[%s281 + $0x10] sm:$0xff]
  %v285 = vld [vmem:[%s281 + $0x18] sm:$0xff]
  %v286 = vld [vmem:[%s281 + $0x20] sm:$0xff]
  %v287 = vld [vmem:[%s281 + $0x28] sm:$0xff]
  %v288 = vld [vmem:[%s281 + $0x30] sm:$0xff]
  %v289 = vld [vmem:[%s281 + $0x38] sm:$0xff]
  %v290 = vld [vmem:[%s281 + $0x40] sm:$0xff]
  %v291 = vld [vmem:[%s281 + $0x48] sm:$0xff]
  %v292 = vld [vmem:[%s281 + $0x50] sm:$0xff]
  %v293 = vld [vmem:[%s281 + $0x58] sm:$0xff]
  %v294 = vld [vmem:[%s281 + $0x60] sm:$0xff]
  %v295 = vld [vmem:[%s281 + $0x68] sm:$0xff]
  %v296 = vld [vmem:[%s281 + $0x70] sm:$0xff]
  %v297 = vld [vmem:[%s281 + $0x78] sm:$0xff]
  %v298 = vld [vmem:[%s281 + $0x80] sm:$0xff]
  %v299 = vld [vmem:[%s281 + $0x88] sm:$0xff]
  %v300 = vld [vmem:[%s281 + $0x90] sm:$0xff]
  %v301 = vld [vmem:[%s281 + $0x98] sm:$0xff]
  %v302 = vld [vmem:[%s281 + $0xa0] sm:$0xff]
  %v303 = vlaneseq
  %v304 = vshrl.u32 %v303, 7
  %v305 = vsub.s32 1, %v304
  %v306 = vrot.slane %v204, %v305
  %v307 = vlaneseq
  %v308 = vshrl.u32 %v307, 7
  %v309 = vsub.s32 5, %v308
  %v310 = vrot.slane %v204, %v309
  %v311 = vlaneseq
  %v312 = vshrl.u32 %v311, 7
  %v313 = vsub.s32 1, %v312
  %v314 = vrot.slane %v205, %v313
  %v318 = vlaneseq
  %v319 = vshrl.u32 %v318, 7
  %v320 = vsub.s32 1, %v319
  %v321 = vrot.slane %v306, %v320
  %v322 = vlaneseq
  %v323 = vshrl.u32 %v322, 7
  %v324 = vsub.s32 1, %v323
  %v325 = vrot.slane %v310, %v324
  %v326 = vlaneseq
  %v327 = vshrl.u32 %v326, 7
  %v328 = vsub.s32 1, %v327
  %v329 = vrot.slane %v314, %v328
  %v330 = vmul.f32 %v282, %v321
  %v331 = vmul.f32 %v283, %v325
  %v332 = vmul.f32 %v284, %v329
  %v333 = vmul.f32 %v285, %v321
  %v334 = vmul.f32 %v286, %v325
  %v335 = vmul.f32 %v287, %v329
  %v336 = vmul.f32 %v288, %v321
  %v337 = vmul.f32 %v289, %v325
  %v338 = vmul.f32 %v290, %v329
  %v339 = vmul.f32 %v291, %v321
  %v340 = vmul.f32 %v292, %v325
  %v341 = vmul.f32 %v293, %v329
  %v342 = vmul.f32 %v294, %v321
  %v343 = vmul.f32 %v295, %v325
  %v344 = vmul.f32 %v296, %v329
  %v345 = vmul.f32 %v297, %v321
  %v346 = vmul.f32 %v298, %v325
  %v347 = vmul.f32 %v299, %v329
  %v348 = vmul.f32 %v300, %v321
  %v349 = vmul.f32 %v301, %v325
  %v350 = vmul.f32 %v302, %v329
  %v351 = vadd.f32 %v260, %v330
  %v352 = vadd.f32 %v261, %v331
  %v353 = vadd.f32 %v262, %v332
  %v354 = vadd.f32 %v263, %v333
  %v355 = vadd.f32 %v264, %v334
  %v356 = vadd.f32 %v265, %v335
  %v357 = vadd.f32 %v266, %v336
  %v358 = vadd.f32 %v267, %v337
  %v359 = vadd.f32 %v268, %v338
  %v360 = vadd.f32 %v269, %v339
  %v361 = vadd.f32 %v270, %v340
  %v362 = vadd.f32 %v271, %v341
  %v363 = vadd.f32 %v272, %v342
  %v364 = vadd.f32 %v273, %v343
  %v365 = vadd.f32 %v274, %v344
  %v366 = vadd.f32 %v275, %v345
  %v367 = vadd.f32 %v276, %v346
  %v368 = vadd.f32 %v277, %v347
  %v369 = vadd.f32 %v278, %v348
  %v370 = vadd.f32 %v279, %v349
  %v371 = vadd.f32 %v280, %v350
  %s372 = scalar_lea.vmem %s0, 384
  %v373 = vld [vmem:[%s372] sm:$0xff]
  %v374 = vld [vmem:[%s372 + $0x8] sm:$0xff]
  %v375 = vld [vmem:[%s372 + $0x10] sm:$0xff]
  %v376 = vld [vmem:[%s372 + $0x18] sm:$0xff]
  %v377 = vld [vmem:[%s372 + $0x20] sm:$0xff]
  %v378 = vld [vmem:[%s372 + $0x28] sm:$0xff]
  %v379 = vld [vmem:[%s372 + $0x30] sm:$0xff]
  %v380 = vld [vmem:[%s372 + $0x38] sm:$0xff]
  %v381 = vld [vmem:[%s372 + $0x40] sm:$0xff]
  %v382 = vld [vmem:[%s372 + $0x48] sm:$0xff]
  %v383 = vld [vmem:[%s372 + $0x50] sm:$0xff]
  %v384 = vld [vmem:[%s372 + $0x58] sm:$0xff]
  %v385 = vld [vmem:[%s372 + $0x60] sm:$0xff]
  %v386 = vld [vmem:[%s372 + $0x68] sm:$0xff]
  %v387 = vld [vmem:[%s372 + $0x70] sm:$0xff]
  %v388 = vld [vmem:[%s372 + $0x78] sm:$0xff]
  %v389 = vld [vmem:[%s372 + $0x80] sm:$0xff]
  %v390 = vld [vmem:[%s372 + $0x88] sm:$0xff]
  %v391 = vld [vmem:[%s372 + $0x90] sm:$0xff]
  %v392 = vld [vmem:[%s372 + $0x98] sm:$0xff]
  %v393 = vld [vmem:[%s372 + $0xa0] sm:$0xff]
  %v394 = vlaneseq
  %v395 = vshrl.u32 %v394, 7
  %v396 = vsub.s32 2, %v395
  %v397 = vrot.slane %v204, %v396
  %v398 = vlaneseq
  %v399 = vshrl.u32 %v398, 7
  %v400 = vsub.s32 6, %v399
  %v401 = vrot.slane %v204, %v400
  %v402 = vlaneseq
  %v403 = vshrl.u32 %v402, 7
  %v404 = vsub.s32 2, %v403
  %v405 = vrot.slane %v205, %v404
  %v409 = vlaneseq
  %v410 = vshrl.u32 %v409, 7
  %v411 = vsub.s32 2, %v410
  %v412 = vrot.slane %v397, %v411
  %v413 = vlaneseq
  %v414 = vshrl.u32 %v413, 7
  %v415 = vsub.s32 2, %v414
  %v416 = vrot.slane %v401, %v415
  %v417 = vlaneseq
  %v418 = vshrl.u32 %v417, 7
  %v419 = vsub.s32 2, %v418
  %v420 = vrot.slane %v405, %v419
  %v421 = vmul.f32 %v373, %v412
  %v422 = vmul.f32 %v374, %v416
  %v423 = vmul.f32 %v375, %v420
  %v424 = vmul.f32 %v376, %v412
  %v425 = vmul.f32 %v377, %v416
  %v426 = vmul.f32 %v378, %v420
  %v427 = vmul.f32 %v379, %v412
  %v428 = vmul.f32 %v380, %v416
  %v429 = vmul.f32 %v381, %v420
  %v430 = vmul.f32 %v382, %v412
  %v431 = vmul.f32 %v383, %v416
  %v432 = vmul.f32 %v384, %v420
  %v433 = vmul.f32 %v385, %v412
  %v434 = vmul.f32 %v386, %v416
  %v435 = vmul.f32 %v387, %v420
  %v436 = vmul.f32 %v388, %v412
  %v437 = vmul.f32 %v389, %v416
  %v438 = vmul.f32 %v390, %v420
  %v439 = vmul.f32 %v391, %v412
  %v440 = vmul.f32 %v392, %v416
  %v441 = vmul.f32 %v393, %v420
  %v442 = vadd.f32 %v351, %v421
  %v443 = vadd.f32 %v352, %v422
  %v444 = vadd.f32 %v353, %v423
  %v445 = vadd.f32 %v354, %v424
  %v446 = vadd.f32 %v355, %v425
  %v447 = vadd.f32 %v356, %v426
  %v448 = vadd.f32 %v357, %v427
  %v449 = vadd.f32 %v358, %v428
  %v450 = vadd.f32 %v359, %v429
  %v451 = vadd.f32 %v360, %v430
  %v452 = vadd.f32 %v361, %v431
  %v453 = vadd.f32 %v362, %v432
  %v454 = vadd.f32 %v363, %v433
  %v455 = vadd.f32 %v364, %v434
  %v456 = vadd.f32 %v365, %v435
  %v457 = vadd.f32 %v366, %v436
  %v458 = vadd.f32 %v367, %v437
  %v459 = vadd.f32 %v368, %v438
  %v460 = vadd.f32 %v369, %v439
  %v461 = vadd.f32 %v370, %v440
  %v462 = vadd.f32 %v371, %v441
  %s463 = scalar_lea.vmem %s0, 576
  %v464 = vld [vmem:[%s463] sm:$0xff]
  %v465 = vld [vmem:[%s463 + $0x8] sm:$0xff]
  %v466 = vld [vmem:[%s463 + $0x10] sm:$0xff]
  %v467 = vld [vmem:[%s463 + $0x18] sm:$0xff]
  %v468 = vld [vmem:[%s463 + $0x20] sm:$0xff]
  %v469 = vld [vmem:[%s463 + $0x28] sm:$0xff]
  %v470 = vld [vmem:[%s463 + $0x30] sm:$0xff]
  %v471 = vld [vmem:[%s463 + $0x38] sm:$0xff]
  %v472 = vld [vmem:[%s463 + $0x40] sm:$0xff]
  %v473 = vld [vmem:[%s463 + $0x48] sm:$0xff]
  %v474 = vld [vmem:[%s463 + $0x50] sm:$0xff]
  %v475 = vld [vmem:[%s463 + $0x58] sm:$0xff]
  %v476 = vld [vmem:[%s463 + $0x60] sm:$0xff]
  %v477 = vld [vmem:[%s463 + $0x68] sm:$0xff]
  %v478 = vld [vmem:[%s463 + $0x70] sm:$0xff]
  %v479 = vld [vmem:[%s463 + $0x78] sm:$0xff]
  %v480 = vld [vmem:[%s463 + $0x80] sm:$0xff]
  %v481 = vld [vmem:[%s463 + $0x88] sm:$0xff]
  %v482 = vld [vmem:[%s463 + $0x90] sm:$0xff]
  %v483 = vld [vmem:[%s463 + $0x98] sm:$0xff]
  %v484 = vld [vmem:[%s463 + $0xa0] sm:$0xff]
  %v487 = vlaneseq
  %v488 = vshrl.u32 %v487, 7
  %v489 = vsub.s32 0, %v488
  %v490 = vrot.slane %v206, %v489
  %v491 = vlaneseq
  %v492 = vshrl.u32 %v491, 7
  %v493 = vsub.s32 4, %v492
  %v494 = vrot.slane %v206, %v493
  %v495 = vlaneseq
  %v496 = vshrl.u32 %v495, 7
  %v497 = vsub.s32 0, %v496
  %v498 = vrot.slane %v207, %v497
  %v502 = vlaneseq
  %v503 = vshrl.u32 %v502, 7
  %v504 = vsub.s32 0, %v503
  %v505 = vrot.slane %v490, %v504
  %v506 = vlaneseq
  %v507 = vshrl.u32 %v506, 7
  %v508 = vsub.s32 0, %v507
  %v509 = vrot.slane %v494, %v508
  %v510 = vlaneseq
  %v511 = vshrl.u32 %v510, 7
  %v512 = vsub.s32 0, %v511
  %v513 = vrot.slane %v498, %v512
  %v514 = vmul.f32 %v464, %v505
  %v515 = vmul.f32 %v465, %v509
  %v516 = vmul.f32 %v466, %v513
  %v517 = vmul.f32 %v467, %v505
  %v518 = vmul.f32 %v468, %v509
  %v519 = vmul.f32 %v469, %v513
  %v520 = vmul.f32 %v470, %v505
  %v521 = vmul.f32 %v471, %v509
  %v522 = vmul.f32 %v472, %v513
  %v523 = vmul.f32 %v473, %v505
  %v524 = vmul.f32 %v474, %v509
  %v525 = vmul.f32 %v475, %v513
  %v526 = vmul.f32 %v476, %v505
  %v527 = vmul.f32 %v477, %v509
  %v528 = vmul.f32 %v478, %v513
  %v529 = vmul.f32 %v479, %v505
  %v530 = vmul.f32 %v480, %v509
  %v531 = vmul.f32 %v481, %v513
  %v532 = vmul.f32 %v482, %v505
  %v533 = vmul.f32 %v483, %v509
  %v534 = vmul.f32 %v484, %v513
  %v535 = vadd.f32 %v442, %v514
  %v536 = vadd.f32 %v443, %v515
  %v537 = vadd.f32 %v444, %v516
  %v538 = vadd.f32 %v445, %v517
  %v539 = vadd.f32 %v446, %v518
  %v540 = vadd.f32 %v447, %v519
  %v541 = vadd.f32 %v448, %v520
  %v542 = vadd.f32 %v449, %v521
  %v543 = vadd.f32 %v450, %v522
  %v544 = vadd.f32 %v451, %v523
  %v545 = vadd.f32 %v452, %v524
  %v546 = vadd.f32 %v453, %v525
  %v547 = vadd.f32 %v454, %v526
  %v548 = vadd.f32 %v455, %v527
  %v549 = vadd.f32 %v456, %v528
  %v550 = vadd.f32 %v457, %v529
  %v551 = vadd.f32 %v458, %v530
  %v552 = vadd.f32 %v459, %v531
  %v553 = vadd.f32 %v460, %v532
  %v554 = vadd.f32 %v461, %v533
  %v555 = vadd.f32 %v462, %v534
  %s556 = scalar_lea.vmem %s0, 768
  %v557 = vld [vmem:[%s556] sm:$0xff]
  %v558 = vld [vmem:[%s556 + $0x8] sm:$0xff]
  %v559 = vld [vmem:[%s556 + $0x10] sm:$0xff]
  %v560 = vld [vmem:[%s556 + $0x18] sm:$0xff]
  %v561 = vld [vmem:[%s556 + $0x20] sm:$0xff]
  %v562 = vld [vmem:[%s556 + $0x28] sm:$0xff]
  %v563 = vld [vmem:[%s556 + $0x30] sm:$0xff]
  %v564 = vld [vmem:[%s556 + $0x38] sm:$0xff]
  %v565 = vld [vmem:[%s556 + $0x40] sm:$0xff]
  %v566 = vld [vmem:[%s556 + $0x48] sm:$0xff]
  %v567 = vld [vmem:[%s556 + $0x50] sm:$0xff]
  %v568 = vld [vmem:[%s556 + $0x58] sm:$0xff]
  %v569 = vld [vmem:[%s556 + $0x60] sm:$0xff]
  %v570 = vld [vmem:[%s556 + $0x68] sm:$0xff]
  %v571 = vld [vmem:[%s556 + $0x70] sm:$0xff]
  %v572 = vld [vmem:[%s556 + $0x78] sm:$0xff]
  %v573 = vld [vmem:[%s556 + $0x80] sm:$0xff]
  %v574 = vld [vmem:[%s556 + $0x88] sm:$0xff]
  %v575 = vld [vmem:[%s556 + $0x90] sm:$0xff]
  %v576 = vld [vmem:[%s556 + $0x98] sm:$0xff]
  %v577 = vld [vmem:[%s556 + $0xa0] sm:$0xff]
  %v578 = vlaneseq
  %v579 = vshrl.u32 %v578, 7
  %v580 = vsub.s32 1, %v579
  %v581 = vrot.slane %v206, %v580
  %v582 = vlaneseq
  %v583 = vshrl.u32 %v582, 7
  %v584 = vsub.s32 5, %v583
  %v585 = vrot.slane %v206, %v584
  %v586 = vlaneseq
  %v587 = vshrl.u32 %v586, 7
  %v588 = vsub.s32 1, %v587
  %v589 = vrot.slane %v207, %v588
  %v593 = vlaneseq
  %v594 = vshrl.u32 %v593, 7
  %v595 = vsub.s32 1, %v594
  %v596 = vrot.slane %v581, %v595
  %v597 = vlaneseq
  %v598 = vshrl.u32 %v597, 7
  %v599 = vsub.s32 1, %v598
  %v600 = vrot.slane %v585, %v599
  %v601 = vlaneseq
  %v602 = vshrl.u32 %v601, 7
  %v603 = vsub.s32 1, %v602
  %v604 = vrot.slane %v589, %v603
  %v605 = vmul.f32 %v557, %v596
  %v606 = vmul.f32 %v558, %v600
  %v607 = vmul.f32 %v559, %v604
  %v608 = vmul.f32 %v560, %v596
  %v609 = vmul.f32 %v561, %v600
  %v610 = vmul.f32 %v562, %v604
  %v611 = vmul.f32 %v563, %v596
  %v612 = vmul.f32 %v564, %v600
  %v613 = vmul.f32 %v565, %v604
  %v614 = vmul.f32 %v566, %v596
  %v615 = vmul.f32 %v567, %v600
  %v616 = vmul.f32 %v568, %v604
  %v617 = vmul.f32 %v569, %v596
  %v618 = vmul.f32 %v570, %v600
  %v619 = vmul.f32 %v571, %v604
  %v620 = vmul.f32 %v572, %v596
  %v621 = vmul.f32 %v573, %v600
  %v622 = vmul.f32 %v574, %v604
  %v623 = vmul.f32 %v575, %v596
  %v624 = vmul.f32 %v576, %v600
  %v625 = vmul.f32 %v577, %v604
  %v626 = vadd.f32 %v535, %v605
  %v627 = vadd.f32 %v536, %v606
  %v628 = vadd.f32 %v537, %v607
  %v629 = vadd.f32 %v538, %v608
  %v630 = vadd.f32 %v539, %v609
  %v631 = vadd.f32 %v540, %v610
  %v632 = vadd.f32 %v541, %v611
  %v633 = vadd.f32 %v542, %v612
  %v634 = vadd.f32 %v543, %v613
  %v635 = vadd.f32 %v544, %v614
  %v636 = vadd.f32 %v545, %v615
  %v637 = vadd.f32 %v546, %v616
  %v638 = vadd.f32 %v547, %v617
  %v639 = vadd.f32 %v548, %v618
  %v640 = vadd.f32 %v549, %v619
  %v641 = vadd.f32 %v550, %v620
  %v642 = vadd.f32 %v551, %v621
  %v643 = vadd.f32 %v552, %v622
  %v644 = vadd.f32 %v553, %v623
  %v645 = vadd.f32 %v554, %v624
  %v646 = vadd.f32 %v555, %v625
  %s647 = scalar_lea.vmem %s0, 960
  %v648 = vld [vmem:[%s647] sm:$0xff]
  %v649 = vld [vmem:[%s647 + $0x8] sm:$0xff]
  %v650 = vld [vmem:[%s647 + $0x10] sm:$0xff]
  %v651 = vld [vmem:[%s647 + $0x18] sm:$0xff]
  %v652 = vld [vmem:[%s647 + $0x20] sm:$0xff]
  %v653 = vld [vmem:[%s647 + $0x28] sm:$0xff]
  %v654 = vld [vmem:[%s647 + $0x30] sm:$0xff]
  %v655 = vld [vmem:[%s647 + $0x38] sm:$0xff]
  %v656 = vld [vmem:[%s647 + $0x40] sm:$0xff]
  %v657 = vld [vmem:[%s647 + $0x48] sm:$0xff]
  %v658 = vld [vmem:[%s647 + $0x50] sm:$0xff]
  %v659 = vld [vmem:[%s647 + $0x58] sm:$0xff]
  %v660 = vld [vmem:[%s647 + $0x60] sm:$0xff]
  %v661 = vld [vmem:[%s647 + $0x68] sm:$0xff]
  %v662 = vld [vmem:[%s647 + $0x70] sm:$0xff]
  %v663 = vld [vmem:[%s647 + $0x78] sm:$0xff]
  %v664 = vld [vmem:[%s647 + $0x80] sm:$0xff]
  %v665 = vld [vmem:[%s647 + $0x88] sm:$0xff]
  %v666 = vld [vmem:[%s647 + $0x90] sm:$0xff]
  %v667 = vld [vmem:[%s647 + $0x98] sm:$0xff]
  %v668 = vld [vmem:[%s647 + $0xa0] sm:$0xff]
  %v669 = vlaneseq
  %v670 = vshrl.u32 %v669, 7
  %v671 = vsub.s32 2, %v670
  %v672 = vrot.slane %v206, %v671
  %v673 = vlaneseq
  %v674 = vshrl.u32 %v673, 7
  %v675 = vsub.s32 6, %v674
  %v676 = vrot.slane %v206, %v675
  %v677 = vlaneseq
  %v678 = vshrl.u32 %v677, 7
  %v679 = vsub.s32 2, %v678
  %v680 = vrot.slane %v207, %v679
  %v684 = vlaneseq
  %v685 = vshrl.u32 %v684, 7
  %v686 = vsub.s32 2, %v685
  %v687 = vrot.slane %v672, %v686
  %v688 = vlaneseq
  %v689 = vshrl.u32 %v688, 7
  %v690 = vsub.s32 2, %v689
  %v691 = vrot.slane %v676, %v690
  %v692 = vlaneseq
  %v693 = vshrl.u32 %v692, 7
  %v694 = vsub.s32 2, %v693
  %v695 = vrot.slane %v680, %v694
  %v696 = vmul.f32 %v648, %v687
  %v697 = vmul.f32 %v649, %v691
  %v698 = vmul.f32 %v650, %v695
  %v699 = vmul.f32 %v651, %v687
  %v700 = vmul.f32 %v652, %v691
  %v701 = vmul.f32 %v653, %v695
  %v702 = vmul.f32 %v654, %v687
  %v703 = vmul.f32 %v655, %v691
  %v704 = vmul.f32 %v656, %v695
  %v705 = vmul.f32 %v657, %v687
  %v706 = vmul.f32 %v658, %v691
  %v707 = vmul.f32 %v659, %v695
  %v708 = vmul.f32 %v660, %v687
  %v709 = vmul.f32 %v661, %v691
  %v710 = vmul.f32 %v662, %v695
  %v711 = vmul.f32 %v663, %v687
  %v712 = vmul.f32 %v664, %v691
  %v713 = vmul.f32 %v665, %v695
  %v714 = vmul.f32 %v666, %v687
  %v715 = vmul.f32 %v667, %v691
  %v716 = vmul.f32 %v668, %v695
  %v717 = vadd.f32 %v626, %v696
  %v718 = vadd.f32 %v627, %v697
  %v719 = vadd.f32 %v628, %v698
  %v720 = vadd.f32 %v629, %v699
  %v721 = vadd.f32 %v630, %v700
  %v722 = vadd.f32 %v631, %v701
  %v723 = vadd.f32 %v632, %v702
  %v724 = vadd.f32 %v633, %v703
  %v725 = vadd.f32 %v634, %v704
  %v726 = vadd.f32 %v635, %v705
  %v727 = vadd.f32 %v636, %v706
  %v728 = vadd.f32 %v637, %v707
  %v729 = vadd.f32 %v638, %v708
  %v730 = vadd.f32 %v639, %v709
  %v731 = vadd.f32 %v640, %v710
  %v732 = vadd.f32 %v641, %v711
  %v733 = vadd.f32 %v642, %v712
  %v734 = vadd.f32 %v643, %v713
  %v735 = vadd.f32 %v644, %v714
  %v736 = vadd.f32 %v645, %v715
  %v737 = vadd.f32 %v646, %v716
  %s738 = scalar_lea.vmem %s0, 24
  %v739 = vld [vmem:[%s738] sm:$0xff]
  %v740 = vld [vmem:[%s738 + $0x8] sm:$0xff]
  %v741 = vld [vmem:[%s738 + $0x10] sm:$0xff]
  %v742 = vld [vmem:[%s738 + $0x18] sm:$0xff]
  %v743 = vld [vmem:[%s738 + $0x20] sm:$0xff]
  %v744 = vld [vmem:[%s738 + $0x28] sm:$0xff]
  %v745 = vld [vmem:[%s738 + $0x30] sm:$0xff]
  %v746 = vld [vmem:[%s738 + $0x38] sm:$0xff]
  %v747 = vld [vmem:[%s738 + $0x40] sm:$0xff]
  %v748 = vld [vmem:[%s738 + $0x48] sm:$0xff]
  %v749 = vld [vmem:[%s738 + $0x50] sm:$0xff]
  %v750 = vld [vmem:[%s738 + $0x58] sm:$0xff]
  %v751 = vld [vmem:[%s738 + $0x60] sm:$0xff]
  %v752 = vld [vmem:[%s738 + $0x68] sm:$0xff]
  %v753 = vld [vmem:[%s738 + $0x70] sm:$0xff]
  %v754 = vld [vmem:[%s738 + $0x78] sm:$0xff]
  %v755 = vld [vmem:[%s738 + $0x80] sm:$0xff]
  %v756 = vld [vmem:[%s738 + $0x88] sm:$0xff]
  %v757 = vld [vmem:[%s738 + $0x90] sm:$0xff]
  %v758 = vld [vmem:[%s738 + $0x98] sm:$0xff]
  %v759 = vld [vmem:[%s738 + $0xa0] sm:$0xff]
  %v762 = vlaneseq
  %v763 = vshrl.u32 %v762, 7
  %v764 = vsub.s32 0, %v763
  %v765 = vrot.slane %v208, %v764
  %v766 = vlaneseq
  %v767 = vshrl.u32 %v766, 7
  %v768 = vsub.s32 4, %v767
  %v769 = vrot.slane %v208, %v768
  %v770 = vlaneseq
  %v771 = vshrl.u32 %v770, 7
  %v772 = vsub.s32 0, %v771
  %v773 = vrot.slane %v209, %v772
  %v777 = vlaneseq
  %v778 = vshrl.u32 %v777, 7
  %v779 = vsub.s32 0, %v778
  %v780 = vrot.slane %v765, %v779
  %v781 = vlaneseq
  %v782 = vshrl.u32 %v781, 7
  %v783 = vsub.s32 0, %v782
  %v784 = vrot.slane %v769, %v783
  %v785 = vlaneseq
  %v786 = vshrl.u32 %v785, 7
  %v787 = vsub.s32 0, %v786
  %v788 = vrot.slane %v773, %v787
  %v789 = vmul.f32 %v739, %v780
  %v790 = vmul.f32 %v740, %v784
  %v791 = vmul.f32 %v741, %v788
  %v792 = vmul.f32 %v742, %v780
  %v793 = vmul.f32 %v743, %v784
  %v794 = vmul.f32 %v744, %v788
  %v795 = vmul.f32 %v745, %v780
  %v796 = vmul.f32 %v746, %v784
  %v797 = vmul.f32 %v747, %v788
  %v798 = vmul.f32 %v748, %v780
  %v799 = vmul.f32 %v749, %v784
  %v800 = vmul.f32 %v750, %v788
  %v801 = vmul.f32 %v751, %v780
  %v802 = vmul.f32 %v752, %v784
  %v803 = vmul.f32 %v753, %v788
  %v804 = vmul.f32 %v754, %v780
  %v805 = vmul.f32 %v755, %v784
  %v806 = vmul.f32 %v756, %v788
  %v807 = vmul.f32 %v757, %v780
  %v808 = vmul.f32 %v758, %v784
  %v809 = vmul.f32 %v759, %v788
  %v810 = vadd.f32 %v717, %v789
  %v811 = vadd.f32 %v718, %v790
  %v812 = vadd.f32 %v719, %v791
  %v813 = vadd.f32 %v720, %v792
  %v814 = vadd.f32 %v721, %v793
  %v815 = vadd.f32 %v722, %v794
  %v816 = vadd.f32 %v723, %v795
  %v817 = vadd.f32 %v724, %v796
  %v818 = vadd.f32 %v725, %v797
  %v819 = vadd.f32 %v726, %v798
  %v820 = vadd.f32 %v727, %v799
  %v821 = vadd.f32 %v728, %v800
  %v822 = vadd.f32 %v729, %v801
  %v823 = vadd.f32 %v730, %v802
  %v824 = vadd.f32 %v731, %v803
  %v825 = vadd.f32 %v732, %v804
  %v826 = vadd.f32 %v733, %v805
  %v827 = vadd.f32 %v734, %v806
  %v828 = vadd.f32 %v735, %v807
  %v829 = vadd.f32 %v736, %v808
  %v830 = vadd.f32 %v737, %v809
  %s831 = scalar_lea.vmem %s0, 216
  %v832 = vld [vmem:[%s831] sm:$0xff]
  %v833 = vld [vmem:[%s831 + $0x8] sm:$0xff]
  %v834 = vld [vmem:[%s831 + $0x10] sm:$0xff]
  %v835 = vld [vmem:[%s831 + $0x18] sm:$0xff]
  %v836 = vld [vmem:[%s831 + $0x20] sm:$0xff]
  %v837 = vld [vmem:[%s831 + $0x28] sm:$0xff]
  %v838 = vld [vmem:[%s831 + $0x30] sm:$0xff]
  %v839 = vld [vmem:[%s831 + $0x38] sm:$0xff]
  %v840 = vld [vmem:[%s831 + $0x40] sm:$0xff]
  %v841 = vld [vmem:[%s831 + $0x48] sm:$0xff]
  %v842 = vld [vmem:[%s831 + $0x50] sm:$0xff]
  %v843 = vld [vmem:[%s831 + $0x58] sm:$0xff]
  %v844 = vld [vmem:[%s831 + $0x60] sm:$0xff]
  %v845 = vld [vmem:[%s831 + $0x68] sm:$0xff]
  %v846 = vld [vmem:[%s831 + $0x70] sm:$0xff]
  %v847 = vld [vmem:[%s831 + $0x78] sm:$0xff]
  %v848 = vld [vmem:[%s831 + $0x80] sm:$0xff]
  %v849 = vld [vmem:[%s831 + $0x88] sm:$0xff]
  %v850 = vld [vmem:[%s831 + $0x90] sm:$0xff]
  %v851 = vld [vmem:[%s831 + $0x98] sm:$0xff]
  %v852 = vld [vmem:[%s831 + $0xa0] sm:$0xff]
  %v853 = vlaneseq
  %v854 = vshrl.u32 %v853, 7
  %v855 = vsub.s32 1, %v854
  %v856 = vrot.slane %v208, %v855
  %v857 = vlaneseq
  %v858 = vshrl.u32 %v857, 7
  %v859 = vsub.s32 5, %v858
  %v860 = vrot.slane %v208, %v859
  %v861 = vlaneseq
  %v862 = vshrl.u32 %v861, 7
  %v863 = vsub.s32 1, %v862
  %v864 = vrot.slane %v209, %v863
  %v868 = vlaneseq
  %v869 = vshrl.u32 %v868, 7
  %v870 = vsub.s32 1, %v869
  %v871 = vrot.slane %v856, %v870
  %v872 = vlaneseq
  %v873 = vshrl.u32 %v872, 7
  %v874 = vsub.s32 1, %v873
  %v875 = vrot.slane %v860, %v874
  %v876 = vlaneseq
  %v877 = vshrl.u32 %v876, 7
  %v878 = vsub.s32 1, %v877
  %v879 = vrot.slane %v864, %v878
  %v880 = vmul.f32 %v832, %v871
  %v881 = vmul.f32 %v833, %v875
  %v882 = vmul.f32 %v834, %v879
  %v883 = vmul.f32 %v835, %v871
  %v884 = vmul.f32 %v836, %v875
  %v885 = vmul.f32 %v837, %v879
  %v886 = vmul.f32 %v838, %v871
  %v887 = vmul.f32 %v839, %v875
  %v888 = vmul.f32 %v840, %v879
  %v889 = vmul.f32 %v841, %v871
  %v890 = vmul.f32 %v842, %v875
  %v891 = vmul.f32 %v843, %v879
  %v892 = vmul.f32 %v844, %v871
  %v893 = vmul.f32 %v845, %v875
  %v894 = vmul.f32 %v846, %v879
  %v895 = vmul.f32 %v847, %v871
  %v896 = vmul.f32 %v848, %v875
  %v897 = vmul.f32 %v849, %v879
  %v898 = vmul.f32 %v850, %v871
  %v899 = vmul.f32 %v851, %v875
  %v900 = vmul.f32 %v852, %v879
  %v901 = vadd.f32 %v810, %v880
  %v902 = vadd.f32 %v811, %v881
  %v903 = vadd.f32 %v812, %v882
  %v904 = vadd.f32 %v813, %v883
  %v905 = vadd.f32 %v814, %v884
  %v906 = vadd.f32 %v815, %v885
  %v907 = vadd.f32 %v816, %v886
  %v908 = vadd.f32 %v817, %v887
  %v909 = vadd.f32 %v818, %v888
  %v910 = vadd.f32 %v819, %v889
  %v911 = vadd.f32 %v820, %v890
  %v912 = vadd.f32 %v821, %v891
  %v913 = vadd.f32 %v822, %v892
  %v914 = vadd.f32 %v823, %v893
  %v915 = vadd.f32 %v824, %v894
  %v916 = vadd.f32 %v825, %v895
  %v917 = vadd.f32 %v826, %v896
  %v918 = vadd.f32 %v827, %v897
  %v919 = vadd.f32 %v828, %v898
  %v920 = vadd.f32 %v829, %v899
  %v921 = vadd.f32 %v830, %v900
  %s922 = scalar_lea.vmem %s0, 408
  %v923 = vld [vmem:[%s922] sm:$0xff]
  %v924 = vld [vmem:[%s922 + $0x8] sm:$0xff]
  %v925 = vld [vmem:[%s922 + $0x10] sm:$0xff]
  %v926 = vld [vmem:[%s922 + $0x18] sm:$0xff]
  %v927 = vld [vmem:[%s922 + $0x20] sm:$0xff]
  %v928 = vld [vmem:[%s922 + $0x28] sm:$0xff]
  %v929 = vld [vmem:[%s922 + $0x30] sm:$0xff]
  %v930 = vld [vmem:[%s922 + $0x38] sm:$0xff]
  %v931 = vld [vmem:[%s922 + $0x40] sm:$0xff]
  %v932 = vld [vmem:[%s922 + $0x48] sm:$0xff]
  %v933 = vld [vmem:[%s922 + $0x50] sm:$0xff]
  %v934 = vld [vmem:[%s922 + $0x58] sm:$0xff]
  %v935 = vld [vmem:[%s922 + $0x60] sm:$0xff]
  %v936 = vld [vmem:[%s922 + $0x68] sm:$0xff]
  %v937 = vld [vmem:[%s922 + $0x70] sm:$0xff]
  %v938 = vld [vmem:[%s922 + $0x78] sm:$0xff]
  %v939 = vld [vmem:[%s922 + $0x80] sm:$0xff]
  %v940 = vld [vmem:[%s922 + $0x88] sm:$0xff]
  %v941 = vld [vmem:[%s922 + $0x90] sm:$0xff]
  %v942 = vld [vmem:[%s922 + $0x98] sm:$0xff]
  %v943 = vld [vmem:[%s922 + $0xa0] sm:$0xff]
  %v944 = vlaneseq
  %v945 = vshrl.u32 %v944, 7
  %v946 = vsub.s32 2, %v945
  %v947 = vrot.slane %v208, %v946
  %v948 = vlaneseq
  %v949 = vshrl.u32 %v948, 7
  %v950 = vsub.s32 6, %v949
  %v951 = vrot.slane %v208, %v950
  %v952 = vlaneseq
  %v953 = vshrl.u32 %v952, 7
  %v954 = vsub.s32 2, %v953
  %v955 = vrot.slane %v209, %v954
  %v959 = vlaneseq
  %v960 = vshrl.u32 %v959, 7
  %v961 = vsub.s32 2, %v960
  %v962 = vrot.slane %v947, %v961
  %v963 = vlaneseq
  %v964 = vshrl.u32 %v963, 7
  %v965 = vsub.s32 2, %v964
  %v966 = vrot.slane %v951, %v965
  %v967 = vlaneseq
  %v968 = vshrl.u32 %v967, 7
  %v969 = vsub.s32 2, %v968
  %v970 = vrot.slane %v955, %v969
  %v971 = vmul.f32 %v923, %v962
  %v972 = vmul.f32 %v924, %v966
  %v973 = vmul.f32 %v925, %v970
  %v974 = vmul.f32 %v926, %v962
  %v975 = vmul.f32 %v927, %v966
  %v976 = vmul.f32 %v928, %v970
  %v977 = vmul.f32 %v929, %v962
  %v978 = vmul.f32 %v930, %v966
  %v979 = vmul.f32 %v931, %v970
  %v980 = vmul.f32 %v932, %v962
  %v981 = vmul.f32 %v933, %v966
  %v982 = vmul.f32 %v934, %v970
  %v983 = vmul.f32 %v935, %v962
  %v984 = vmul.f32 %v936, %v966
  %v985 = vmul.f32 %v937, %v970
  %v986 = vmul.f32 %v938, %v962
  %v987 = vmul.f32 %v939, %v966
  %v988 = vmul.f32 %v940, %v970
  %v989 = vmul.f32 %v941, %v962
  %v990 = vmul.f32 %v942, %v966
  %v991 = vmul.f32 %v943, %v970
  %v992 = vadd.f32 %v901, %v971
  %v993 = vadd.f32 %v902, %v972
  %v994 = vadd.f32 %v903, %v973
  %v995 = vadd.f32 %v904, %v974
  %v996 = vadd.f32 %v905, %v975
  %v997 = vadd.f32 %v906, %v976
  %v998 = vadd.f32 %v907, %v977
  %v999 = vadd.f32 %v908, %v978
  %v1000 = vadd.f32 %v909, %v979
  %v1001 = vadd.f32 %v910, %v980
  %v1002 = vadd.f32 %v911, %v981
  %v1003 = vadd.f32 %v912, %v982
  %v1004 = vadd.f32 %v913, %v983
  %v1005 = vadd.f32 %v914, %v984
  %v1006 = vadd.f32 %v915, %v985
  %v1007 = vadd.f32 %v916, %v986
  %v1008 = vadd.f32 %v917, %v987
  %v1009 = vadd.f32 %v918, %v988
  %v1010 = vadd.f32 %v919, %v989
  %v1011 = vadd.f32 %v920, %v990
  %v1012 = vadd.f32 %v921, %v991
  %v1013 = vadd.f32 %v992, %v995
  %v1014 = vadd.f32 %v1013, %v998
  %v1015 = vadd.f32 %v1014, %v1001
  %v1016 = vadd.f32 %v1015, %v1004
  %v1017 = vadd.f32 %v1016, %v1007
  %v1018 = vadd.f32 %v1017, %v1010
  %v1019 = vrot.slane %v1018, 4
  %v1020 = vadd.f32 %v1018, %v1019
  %v1021 = vrot.slane %v1020, 2
  %v1022 = vadd.f32 %v1020, %v1021
  %v1023 = vrot.slane %v1022, 1
  %v1024 = vadd.f32 %v1022, %v1023
  %v1025 = vadd.f32 %v993, %v996
  %v1026 = vadd.f32 %v1025, %v999
  %v1027 = vadd.f32 %v1026, %v1002
  %v1028 = vadd.f32 %v1027, %v1005
  %v1029 = vadd.f32 %v1028, %v1008
  %v1030 = vadd.f32 %v1029, %v1011
  %v1031 = vrot.slane %v1030, 4
  %v1032 = vadd.f32 %v1030, %v1031
  %v1033 = vrot.slane %v1032, 2
  %v1034 = vadd.f32 %v1032, %v1033
  %v1035 = vrot.slane %v1034, 1
  %v1036 = vadd.f32 %v1034, %v1035
  %v1037 = vadd.f32 %v994, %v997
  %v1038 = vadd.f32 %v1037, %v1000
  %v1039 = vadd.f32 %v1038, %v1003
  %v1040 = vadd.f32 %v1039, %v1006
  %v1041 = vadd.f32 %v1040, %v1009
  %v1042 = vadd.f32 %v1041, %v1012
  %v1043 = vrot.slane %v1042, 4
  %v1044 = vadd.f32 %v1042, %v1043
  %v1045 = vrot.slane %v1044, 2
  %v1046 = vadd.f32 %v1044, %v1045
  %v1047 = vrot.slane %v1046, 1
  %v1048 = vadd.f32 %v1046, %v1047
  %v1049 = vmul.f32 %v992, %v992
  %v1050 = vmul.f32 %v993, %v993
  %v1051 = vmul.f32 %v994, %v994
  %v1052 = vmul.f32 %v995, %v995
  %v1053 = vmul.f32 %v996, %v996
  %v1054 = vmul.f32 %v997, %v997
  %v1055 = vmul.f32 %v998, %v998
  %v1056 = vmul.f32 %v999, %v999
  %v1057 = vmul.f32 %v1000, %v1000
  %v1058 = vmul.f32 %v1001, %v1001
  %v1059 = vmul.f32 %v1002, %v1002
  %v1060 = vmul.f32 %v1003, %v1003
  %v1061 = vmul.f32 %v1004, %v1004
  %v1062 = vmul.f32 %v1005, %v1005
  %v1063 = vmul.f32 %v1006, %v1006
  %v1064 = vmul.f32 %v1007, %v1007
  %v1065 = vmul.f32 %v1008, %v1008
  %v1066 = vmul.f32 %v1009, %v1009
  %v1067 = vmul.f32 %v1010, %v1010
  %v1068 = vmul.f32 %v1011, %v1011
  %v1069 = vmul.f32 %v1012, %v1012
  %v1070 = vadd.f32 %v1049, %v1052
  %v1071 = vadd.f32 %v1070, %v1055
  %v1072 = vadd.f32 %v1071, %v1058
  %v1073 = vadd.f32 %v1072, %v1061
  %v1074 = vadd.f32 %v1073, %v1064
  %v1075 = vadd.f32 %v1074, %v1067
  %v1076 = vrot.slane %v1075, 4
  %v1077 = vadd.f32 %v1075, %v1076
  %v1078 = vrot.slane %v1077, 2
  %v1079 = vadd.f32 %v1077, %v1078
  %v1080 = vrot.slane %v1079, 1
  %v1081 = vadd.f32 %v1079, %v1080
  %v1082 = vadd.f32 %v1050, %v1053
  %v1083 = vadd.f32 %v1082, %v1056
  %v1084 = vadd.f32 %v1083, %v1059
  %v1085 = vadd.f32 %v1084, %v1062
  %v1086 = vadd.f32 %v1085, %v1065
  %v1087 = vadd.f32 %v1086, %v1068
  %v1088 = vrot.slane %v1087, 4
  %v1089 = vadd.f32 %v1087, %v1088
  %v1090 = vrot.slane %v1089, 2
  %v1091 = vadd.f32 %v1089, %v1090
  %v1092 = vrot.slane %v1091, 1
  %v1093 = vadd.f32 %v1091, %v1092
  %v1094 = vadd.f32 %v1051, %v1054
  %v1095 = vadd.f32 %v1094, %v1057
  %v1096 = vadd.f32 %v1095, %v1060
  %v1097 = vadd.f32 %v1096, %v1063
  %v1098 = vadd.f32 %v1097, %v1066
  %v1099 = vadd.f32 %v1098, %v1069
  %v1100 = vrot.slane %v1099, 4
  %v1101 = vadd.f32 %v1099, %v1100
  %v1102 = vrot.slane %v1101, 2
  %v1103 = vadd.f32 %v1101, %v1102
  %v1104 = vrot.slane %v1103, 1
  %v1105 = vadd.f32 %v1103, %v1104
  %v1106 = vmul.f32 %v1024, 0.020408163
  %v1107 = vmul.f32 %v1036, 0.020408163
  %v1108 = vmul.f32 %v1048, 0.020408163
  %v1109 = vmul.f32 %v1081, 0.020408163
  %v1110 = vmul.f32 %v1093, 0.020408163
  %v1111 = vmul.f32 %v1105, 0.020408163
  %v1112 = vmul.f32 %v1106, %v1106
  %v1113 = vmul.f32 %v1107, %v1107
  %v1114 = vmul.f32 %v1108, %v1108
  %v1115 = vsub.f32 %v1109, %v1112
  %v1116 = vsub.f32 %v1110, %v1113
  %v1117 = vsub.f32 %v1111, %v1114
  %v1118 = vadd.f32 %v1115, 1e-05
  %v1119 = vadd.f32 %v1116, 1e-05
  %v1120 = vadd.f32 %v1117, 1e-05
  %v1121 = vrsqrt.pop %v1118
  %v1122 = vrsqrt.pop %v1119
  %v1123 = vrsqrt.pop %v1120
  %v1124 = vld [vmem:[%s2] sm:$0x7]
  %v1126 = vlaneseq
  %v1127 = vshrl.u32 %v1126, 7
  %v1128 = vsub.s32 0, %v1127
  %v1129 = vrot.slane %v1124, %v1128
  %v1130 = vlaneseq
  %v1131 = vshrl.u32 %v1130, 7
  %v1132 = vsub.s32 1, %v1131
  %v1133 = vrot.slane %v1124, %v1132
  %v1134 = vlaneseq
  %v1135 = vshrl.u32 %v1134, 7
  %v1136 = vsub.s32 2, %v1135
  %v1137 = vrot.slane %v1124, %v1136
  %v1141 = vmul.f32 %v1121, %v1129
  %v1142 = vmul.f32 %v1122, %v1133
  %v1143 = vmul.f32 %v1123, %v1137
  %v1144 = vld [vmem:[%s3] sm:$0x7]
  %v1145 = vmul.f32 %v1106, %v1141
  %v1146 = vmul.f32 %v1107, %v1142
  %v1147 = vmul.f32 %v1108, %v1143
  %v1151 = vcombine.low %v1145, %v1146
  %v1153 = vunpack.c.l.s4 1966171168
  %v1154 = vunpack.c.0.s8 %v1153
  %v1155 = vlaneseq
  %v1156 = vshrl.u32 %v1155, 7
  %v1157 = vsub.s32 %v1154, %v1156
  %v1158 = vrot.slane %v1151, %v1157
  %v1160 = vunpack.c.l.s4 1966171168
  %v1161 = vunpack.c.0.s8 %v1160
  %v1162 = vlaneseq
  %v1163 = vshrl.u32 %v1162, 7
  %v1164 = vsub.s32 %v1161, %v1163
  %v1165 = vrot.slane %v1147, %v1164
  %v1166 = vcombine.low %v1158, %v1165
  %v1168 = vunpack.c.l.s4 1966171168
  %v1169 = vunpack.c.0.s8 %v1168
  %v1170 = vlaneseq
  %v1171 = vshrl.u32 %v1170, 7
  %v1172 = vsub.s32 %v1169, %v1171
  %v1173 = vrot.slane %v1166, %v1172
  %v1175 = vsub.f32 %v1144, %v1173
  %v1176 = vlaneseq
  %v1177 = vshrl.u32 %v1176, 7
  %v1178 = vsub.s32 0, %v1177
  %v1179 = vrot.slane %v1141, %v1178
  %v1180 = vlaneseq
  %v1181 = vshrl.u32 %v1180, 7
  %v1182 = vsub.s32 0, %v1181
  %v1183 = vrot.slane %v1142, %v1182
  %v1184 = vlaneseq
  %v1185 = vshrl.u32 %v1184, 7
  %v1186 = vsub.s32 0, %v1185
  %v1187 = vrot.slane %v1143, %v1186
  %v1188 = vmul.f32 %v992, %v1179
  %v1189 = vmul.f32 %v993, %v1183
  %v1190 = vmul.f32 %v994, %v1187
  %v1191 = vmul.f32 %v995, %v1179
  %v1192 = vmul.f32 %v996, %v1183
  %v1193 = vmul.f32 %v997, %v1187
  %v1194 = vmul.f32 %v998, %v1179
  %v1195 = vmul.f32 %v999, %v1183
  %v1196 = vmul.f32 %v1000, %v1187
  %v1197 = vmul.f32 %v1001, %v1179
  %v1198 = vmul.f32 %v1002, %v1183
  %v1199 = vmul.f32 %v1003, %v1187
  %v1200 = vmul.f32 %v1004, %v1179
  %v1201 = vmul.f32 %v1005, %v1183
  %v1202 = vmul.f32 %v1006, %v1187
  %v1203 = vmul.f32 %v1007, %v1179
  %v1204 = vmul.f32 %v1008, %v1183
  %v1205 = vmul.f32 %v1009, %v1187
  %v1206 = vmul.f32 %v1010, %v1179
  %v1207 = vmul.f32 %v1011, %v1183
  %v1208 = vmul.f32 %v1012, %v1187
  %v1210 = vlaneseq
  %v1211 = vshrl.u32 %v1210, 7
  %v1212 = vsub.s32 0, %v1211
  %v1213 = vrot.slane %v1175, %v1212
  %v1214 = vlaneseq
  %v1215 = vshrl.u32 %v1214, 7
  %v1216 = vsub.s32 1, %v1215
  %v1217 = vrot.slane %v1175, %v1216
  %v1218 = vlaneseq
  %v1219 = vshrl.u32 %v1218, 7
  %v1220 = vsub.s32 2, %v1219
  %v1221 = vrot.slane %v1175, %v1220
  %v1225 = vadd.f32 %v1188, %v1213
  %v1226 = vadd.f32 %v1189, %v1217
  %v1227 = vadd.f32 %v1190, %v1221
  %v1228 = vadd.f32 %v1191, %v1213
  %v1229 = vadd.f32 %v1192, %v1217
  %v1230 = vadd.f32 %v1193, %v1221
  %v1231 = vadd.f32 %v1194, %v1213
  %v1232 = vadd.f32 %v1195, %v1217
  %v1233 = vadd.f32 %v1196, %v1221
  %v1234 = vadd.f32 %v1197, %v1213
  %v1235 = vadd.f32 %v1198, %v1217
  %v1236 = vadd.f32 %v1199, %v1221
  %v1237 = vadd.f32 %v1200, %v1213
  %v1238 = vadd.f32 %v1201, %v1217
  %v1239 = vadd.f32 %v1202, %v1221
  %v1240 = vadd.f32 %v1203, %v1213
  %v1241 = vadd.f32 %v1204, %v1217
  %v1242 = vadd.f32 %v1205, %v1221
  %v1243 = vadd.f32 %v1206, %v1213
  %v1244 = vadd.f32 %v1207, %v1217
  %v1245 = vadd.f32 %v1208, %v1221
  %s1246 = smul.u32 4, 48
  %s1247 = smul.u32 %s1246, 3
  %s1248 = sshll.u32 %s1247, 4
  %1249 = dma.done [#allocation3], %s1248
  %v1250 = vpack.c.bf16 %v1228, %v1225
  %v1251 = vpack.c.bf16 %v1229, %v1226
  %v1252 = vpack.c.bf16 %v1230, %v1227
  %v1253 = vpack.c.bf16 %v1234, %v1231
  %v1254 = vpack.c.bf16 %v1235, %v1232
  %v1255 = vpack.c.bf16 %v1236, %v1233
  %v1256 = vpack.c.bf16 %v1240, %v1237
  %v1257 = vpack.c.bf16 %v1241, %v1238
  %v1258 = vpack.c.bf16 %v1242, %v1239
  %v1259 = vpack.c.bf16 %v1243, %v1243
  %v1260 = vpack.c.bf16 %v1244, %v1244
  %v1261 = vpack.c.bf16 %v1245, %v1245
  %v1262 = vld [vmem:[#allocation2] sm:$0xff]
  %v1263 = vld [vmem:[#allocation2 + $0x8] sm:$0xf]
  %v1264 = vld [vmem:[#allocation2 + $0xc] sm:$0xff]
  %v1265 = vld [vmem:[#allocation2 + $0x14] sm:$0xf]
  %v1266 = vld [vmem:[#allocation2 + $0x18] sm:$0xff]
  %v1267 = vld [vmem:[#allocation2 + $0x20] sm:$0xf]
  %v1268 = vld [vmem:[#allocation2 + $0x24] sm:$0xff]
  %v1269 = vld [vmem:[#allocation2 + $0x2c] sm:$0xf]
  %v1270 = vld [vmem:[#allocation2 + $0x30] sm:$0xff]
  %v1271 = vld [vmem:[#allocation2 + $0x38] sm:$0xf]
  %v1272 = vld [vmem:[#allocation2 + $0x3c] sm:$0xff]
  %v1273 = vld [vmem:[#allocation2 + $0x44] sm:$0xf]
  %v1274 = vld [vmem:[#allocation2 + $0x48] sm:$0xff]
  %v1275 = vld [vmem:[#allocation2 + $0x50] sm:$0xf]
  %v1276 = vld [vmem:[#allocation2 + $0x54] sm:$0xff]
  %v1277 = vld [vmem:[#allocation2 + $0x5c] sm:$0xf]
  %v1278 = vld [vmem:[#allocation2 + $0x60] sm:$0xff]
  %v1279 = vld [vmem:[#allocation2 + $0x68] sm:$0xf]
  %v1280 = vld [vmem:[#allocation2 + $0x6c] sm:$0xff]
  %v1281 = vld [vmem:[#allocation2 + $0x74] sm:$0xf]
  %v1282 = vld [vmem:[#allocation2 + $0x78] sm:$0xff]
  %v1283 = vld [vmem:[#allocation2 + $0x80] sm:$0xf]
  %v1284 = vld [vmem:[#allocation2 + $0x84] sm:$0xff]
  %v1285 = vld [vmem:[#allocation2 + $0x8c] sm:$0xf]
  %v1286 = vld [vmem:[#allocation2 + $0x90] sm:$0xff]
  %v1287 = vld [vmem:[#allocation2 + $0x98] sm:$0xf]
  %v1288 = vld [vmem:[#allocation2 + $0x9c] sm:$0xff]
  %v1289 = vld [vmem:[#allocation2 + $0xa4] sm:$0xf]
  %v1290 = vld [vmem:[#allocation2 + $0xa8] sm:$0xff]
  %v1291 = vld [vmem:[#allocation2 + $0xb0] sm:$0xf]
  %v1292 = vld [vmem:[#allocation2 + $0xb4] sm:$0xff]
  %v1293 = vld [vmem:[#allocation2 + $0xbc] sm:$0xf]
  %v1294 = vld [vmem:[#allocation2 + $0xc0] sm:$0xff]
  %v1295 = vld [vmem:[#allocation2 + $0xc8] sm:$0xf]
  %v1296 = vld [vmem:[#allocation2 + $0xcc] sm:$0xff]
  %v1297 = vld [vmem:[#allocation2 + $0xd4] sm:$0xf]
  %v1298 = vld [vmem:[#allocation2 + $0xd8] sm:$0xff]
  %v1299 = vld [vmem:[#allocation2 + $0xe0] sm:$0xf]
  %v1300 = vld [vmem:[#allocation2 + $0xe4] sm:$0xff]
  %v1301 = vld [vmem:[#allocation2 + $0xec] sm:$0xf]
  %v1302 = vld [vmem:[#allocation2 + $0xf0] sm:$0xff]
  %v1303 = vld [vmem:[#allocation2 + $0xf8] sm:$0xf]
  %v1304 = vld [vmem:[#allocation2 + $0xfc] sm:$0xff]
  %v1305 = vld [vmem:[#allocation2 + $0x104] sm:$0xf]
  %v1306 = vld [vmem:[#allocation2 + $0x108] sm:$0xff]
  %v1307 = vld [vmem:[#allocation2 + $0x110] sm:$0xf]
  %v1308 = vld [vmem:[#allocation2 + $0x114] sm:$0xff]
  %v1309 = vld [vmem:[#allocation2 + $0x11c] sm:$0xf]
  %v1310 = vld [vmem:[#allocation2 + $0x120] sm:$0xff]
  %v1311 = vld [vmem:[#allocation2 + $0x128] sm:$0xf]
  %v1312 = vld [vmem:[#allocation2 + $0x12c] sm:$0xff]
  %v1313 = vld [vmem:[#allocation2 + $0x134] sm:$0xf]
  %v1314 = vld [vmem:[#allocation2 + $0x138] sm:$0xff]
  %v1315 = vld [vmem:[#allocation2 + $0x140] sm:$0xf]
  %v1316 = vld [vmem:[#allocation2 + $0x144] sm:$0xff]
  %v1317 = vld [vmem:[#allocation2 + $0x14c] sm:$0xf]
  %v1318 = vld [vmem:[#allocation2 + $0x150] sm:$0xff]
  %v1319 = vld [vmem:[#allocation2 + $0x158] sm:$0xf]
  %v1320 = vld [vmem:[#allocation2 + $0x15c] sm:$0xff]
  %v1321 = vld [vmem:[#allocation2 + $0x164] sm:$0xf]
  %v1322 = vld [vmem:[#allocation2 + $0x168] sm:$0xff]
  %v1323 = vld [vmem:[#allocation2 + $0x170] sm:$0xf]
  %v1324 = vld [vmem:[#allocation2 + $0x174] sm:$0xff]
  %v1325 = vld [vmem:[#allocation2 + $0x17c] sm:$0xf]
  %v1326 = vld [vmem:[#allocation2 + $0x180] sm:$0xff]
  %v1327 = vld [vmem:[#allocation2 + $0x188] sm:$0xf]
  %v1328 = vld [vmem:[#allocation2 + $0x18c] sm:$0xff]
  %v1329 = vld [vmem:[#allocation2 + $0x194] sm:$0xf]
  %v1330 = vld [vmem:[#allocation2 + $0x198] sm:$0xff]
  %v1331 = vld [vmem:[#allocation2 + $0x1a0] sm:$0xf]
  %v1332 = vld [vmem:[#allocation2 + $0x1a4] sm:$0xff]
  %v1333 = vld [vmem:[#allocation2 + $0x1ac] sm:$0xf]
  %v1334 = vld [vmem:[#allocation2 + $0x1b0] sm:$0xff]
  %v1335 = vld [vmem:[#allocation2 + $0x1b8] sm:$0xf]
  %v1336 = vld [vmem:[#allocation2 + $0x1bc] sm:$0xff]
  %v1337 = vld [vmem:[#allocation2 + $0x1c4] sm:$0xf]
  %v1338 = vld [vmem:[#allocation2 + $0x1c8] sm:$0xff]
  %v1339 = vld [vmem:[#allocation2 + $0x1d0] sm:$0xf]
  %v1340 = vld [vmem:[#allocation2 + $0x1d4] sm:$0xff]
  %v1341 = vld [vmem:[#allocation2 + $0x1dc] sm:$0xf]
  %v1342 = vld [vmem:[#allocation2 + $0x1e0] sm:$0xff]
  %v1343 = vld [vmem:[#allocation2 + $0x1e8] sm:$0xf]
  %v1344 = vld [vmem:[#allocation2 + $0x1ec] sm:$0xff]
  %v1345 = vld [vmem:[#allocation2 + $0x1f4] sm:$0xf]
  %v1346 = vld [vmem:[#allocation2 + $0x1f8] sm:$0xff]
  %v1347 = vld [vmem:[#allocation2 + $0x200] sm:$0xf]
  %v1348 = vld [vmem:[#allocation2 + $0x204] sm:$0xff]
  %v1349 = vld [vmem:[#allocation2 + $0x20c] sm:$0xf]
  %v1350 = vld [vmem:[#allocation2 + $0x210] sm:$0xff]
  %v1351 = vld [vmem:[#allocation2 + $0x218] sm:$0xf]
  %v1352 = vld [vmem:[#allocation2 + $0x21c] sm:$0xff]
  %v1353 = vld [vmem:[#allocation2 + $0x224] sm:$0xf]
  %v1354 = vld [vmem:[#allocation2 + $0x228] sm:$0xff]
  %v1355 = vld [vmem:[#allocation2 + $0x230] sm:$0xf]
  %v1356 = vld [vmem:[#allocation2 + $0x234] sm:$0xff]
  %v1357 = vld [vmem:[#allocation2 + $0x23c] sm:$0xf]
  %v1454 = vunpack.c.l.b16 %v1262
  %v1455 = vunpack.c.h.b16 %v1262
  %v1456 = vunpack.c.l.b16 %v1263
  %v1457 = vunpack.c.l.b16 %v1264
  %v1458 = vunpack.c.h.b16 %v1264
  %v1459 = vunpack.c.l.b16 %v1265
  %v1460 = vunpack.c.l.b16 %v1266
  %v1461 = vunpack.c.h.b16 %v1266
  %v1462 = vunpack.c.l.b16 %v1267
  %v1463 = vunpack.c.l.b16 %v1268
  %v1464 = vunpack.c.h.b16 %v1268
  %v1465 = vunpack.c.l.b16 %v1269
  %v1466 = vunpack.c.l.b16 %v1270
  %v1467 = vunpack.c.h.b16 %v1270
  %v1468 = vunpack.c.l.b16 %v1271
  %v1469 = vunpack.c.l.b16 %v1272
  %v1470 = vunpack.c.h.b16 %v1272
  %v1471 = vunpack.c.l.b16 %v1273
  %v1472 = vunpack.c.l.b16 %v1274
  %v1473 = vunpack.c.h.b16 %v1274
  %v1474 = vunpack.c.l.b16 %v1275
  %v1475 = vunpack.c.l.b16 %v1276
  %v1476 = vunpack.c.h.b16 %v1276
  %v1477 = vunpack.c.l.b16 %v1277
  %v1478 = vunpack.c.l.b16 %v1278
  %v1479 = vunpack.c.h.b16 %v1278
  %v1480 = vunpack.c.l.b16 %v1279
  %v1481 = vunpack.c.l.b16 %v1280
  %v1482 = vunpack.c.h.b16 %v1280
  %v1483 = vunpack.c.l.b16 %v1281
  %v1484 = vunpack.c.l.b16 %v1282
  %v1485 = vunpack.c.h.b16 %v1282
  %v1486 = vunpack.c.l.b16 %v1283
  %v1487 = vunpack.c.l.b16 %v1284
  %v1488 = vunpack.c.h.b16 %v1284
  %v1489 = vunpack.c.l.b16 %v1285
  %v1490 = vunpack.c.l.b16 %v1286
  %v1491 = vunpack.c.h.b16 %v1286
  %v1492 = vunpack.c.l.b16 %v1287
  %v1493 = vunpack.c.l.b16 %v1288
  %v1494 = vunpack.c.h.b16 %v1288
  %v1495 = vunpack.c.l.b16 %v1289
  %v1496 = vunpack.c.l.b16 %v1290
  %v1497 = vunpack.c.h.b16 %v1290
  %v1498 = vunpack.c.l.b16 %v1291
  %v1499 = vunpack.c.l.b16 %v1292
  %v1500 = vunpack.c.h.b16 %v1292
  %v1501 = vunpack.c.l.b16 %v1293
  %v1502 = vunpack.c.l.b16 %v1294
  %v1503 = vunpack.c.h.b16 %v1294
  %v1504 = vunpack.c.l.b16 %v1295
  %v1505 = vunpack.c.l.b16 %v1296
  %v1506 = vunpack.c.h.b16 %v1296
  %v1507 = vunpack.c.l.b16 %v1297
  %v1508 = vunpack.c.l.b16 %v1298
  %v1509 = vunpack.c.h.b16 %v1298
  %v1510 = vunpack.c.l.b16 %v1299
  %v1511 = vunpack.c.l.b16 %v1300
  %v1512 = vunpack.c.h.b16 %v1300
  %v1513 = vunpack.c.l.b16 %v1301
  %v1514 = vunpack.c.l.b16 %v1302
  %v1515 = vunpack.c.h.b16 %v1302
  %v1516 = vunpack.c.l.b16 %v1303
  %v1517 = vunpack.c.l.b16 %v1304
  %v1518 = vunpack.c.h.b16 %v1304
  %v1519 = vunpack.c.l.b16 %v1305
  %v1520 = vunpack.c.l.b16 %v1306
  %v1521 = vunpack.c.h.b16 %v1306
  %v1522 = vunpack.c.l.b16 %v1307
  %v1523 = vunpack.c.l.b16 %v1308
  %v1524 = vunpack.c.h.b16 %v1308
  %v1525 = vunpack.c.l.b16 %v1309
  %v1526 = vunpack.c.l.b16 %v1310
  %v1527 = vunpack.c.h.b16 %v1310
  %v1528 = vunpack.c.l.b16 %v1311
  %v1529 = vunpack.c.l.b16 %v1312
  %v1530 = vunpack.c.h.b16 %v1312
  %v1531 = vunpack.c.l.b16 %v1313
  %v1532 = vunpack.c.l.b16 %v1314
  %v1533 = vunpack.c.h.b16 %v1314
  %v1534 = vunpack.c.l.b16 %v1315
  %v1535 = vunpack.c.l.b16 %v1316
  %v1536 = vunpack.c.h.b16 %v1316
  %v1537 = vunpack.c.l.b16 %v1317
  %v1538 = vunpack.c.l.b16 %v1318
  %v1539 = vunpack.c.h.b16 %v1318
  %v1540 = vunpack.c.l.b16 %v1319
  %v1541 = vunpack.c.l.b16 %v1320
  %v1542 = vunpack.c.h.b16 %v1320
  %v1543 = vunpack.c.l.b16 %v1321
  %v1544 = vunpack.c.l.b16 %v1322
  %v1545 = vunpack.c.h.b16 %v1322
  %v1546 = vunpack.c.l.b16 %v1323
  %v1547 = vunpack.c.l.b16 %v1324
  %v1548 = vunpack.c.h.b16 %v1324
  %v1549 = vunpack.c.l.b16 %v1325
  %v1550 = vunpack.c.l.b16 %v1326
  %v1551 = vunpack.c.h.b16 %v1326
  %v1552 = vunpack.c.l.b16 %v1327
  %v1553 = vunpack.c.l.b16 %v1328
  %v1554 = vunpack.c.h.b16 %v1328
  %v1555 = vunpack.c.l.b16 %v1329
  %v1556 = vunpack.c.l.b16 %v1330
  %v1557 = vunpack.c.h.b16 %v1330
  %v1558 = vunpack.c.l.b16 %v1331
  %v1559 = vunpack.c.l.b16 %v1332
  %v1560 = vunpack.c.h.b16 %v1332
  %v1561 = vunpack.c.l.b16 %v1333
  %v1562 = vunpack.c.l.b16 %v1334
  %v1563 = vunpack.c.h.b16 %v1334
  %v1564 = vunpack.c.l.b16 %v1335
  %v1565 = vunpack.c.l.b16 %v1336
  %v1566 = vunpack.c.h.b16 %v1336
  %v1567 = vunpack.c.l.b16 %v1337
  %v1568 = vunpack.c.l.b16 %v1338
  %v1569 = vunpack.c.h.b16 %v1338
  %v1570 = vunpack.c.l.b16 %v1339
  %v1571 = vunpack.c.l.b16 %v1340
  %v1572 = vunpack.c.h.b16 %v1340
  %v1573 = vunpack.c.l.b16 %v1341
  %v1574 = vunpack.c.l.b16 %v1342
  %v1575 = vunpack.c.h.b16 %v1342
  %v1576 = vunpack.c.l.b16 %v1343
  %v1577 = vunpack.c.l.b16 %v1344
  %v1578 = vunpack.c.h.b16 %v1344
  %v1579 = vunpack.c.l.b16 %v1345
  %v1580 = vunpack.c.l.b16 %v1346
  %v1581 = vunpack.c.h.b16 %v1346
  %v1582 = vunpack.c.l.b16 %v1347
  %v1583 = vunpack.c.l.b16 %v1348
  %v1584 = vunpack.c.h.b16 %v1348
  %v1585 = vunpack.c.l.b16 %v1349
  %v1586 = vunpack.c.l.b16 %v1350
  %v1587 = vunpack.c.h.b16 %v1350
  %v1588 = vunpack.c.l.b16 %v1351
  %v1589 = vunpack.c.l.b16 %v1352
  %v1590 = vunpack.c.h.b16 %v1352
  %v1591 = vunpack.c.l.b16 %v1353
  %v1592 = vunpack.c.l.b16 %v1354
  %v1593 = vunpack.c.h.b16 %v1354
  %v1594 = vunpack.c.l.b16 %v1355
  %v1595 = vunpack.c.l.b16 %v1356
  %v1596 = vunpack.c.h.b16 %v1356
  %v1597 = vunpack.c.l.b16 %v1357
  %v1598 = vpack.c.b16 %v1457, %v1454
  %v1599 = vpack.c.b16 %v1458, %v1455
  %v1600 = vpack.c.b16 %v1459, %v1456
  %v1601 = vpack.c.b16 %v1463, %v1460
  %v1602 = vpack.c.b16 %v1464, %v1461
  %v1603 = vpack.c.b16 %v1465, %v1462
  %v1604 = vpack.c.b16 %v1469, %v1466
  %v1605 = vpack.c.b16 %v1470, %v1467
  %v1606 = vpack.c.b16 %v1471, %v1468
  %v1607 = vpack.c.b16 %v1475, %v1472
  %v1608 = vpack.c.b16 %v1476, %v1473
  %v1609 = vpack.c.b16 %v1477, %v1474
  %v1610 = vpack.c.b16 %v1481, %v1478
  %v1611 = vpack.c.b16 %v1482, %v1479
  %v1612 = vpack.c.b16 %v1483, %v1480
  %v1613 = vpack.c.b16 %v1487, %v1484
  %v1614 = vpack.c.b16 %v1488, %v1485
  %v1615 = vpack.c.b16 %v1489, %v1486
  %v1616 = vpack.c.b16 %v1493, %v1490
  %v1617 = vpack.c.b16 %v1494, %v1491
  %v1618 = vpack.c.b16 %v1495, %v1492
  %v1619 = vpack.c.b16 %v1499, %v1496
  %v1620 = vpack.c.b16 %v1500, %v1497
  %v1621 = vpack.c.b16 %v1501, %v1498
  %v1622 = vpack.c.b16 %v1505, %v1502
  %v1623 = vpack.c.b16 %v1506, %v1503
  %v1624 = vpack.c.b16 %v1507, %v1504
  %v1625 = vpack.c.b16 %v1511, %v1508
  %v1626 = vpack.c.b16 %v1512, %v1509
  %v1627 = vpack.c.b16 %v1513, %v1510
  %v1628 = vpack.c.b16 %v1517, %v1514
  %v1629 = vpack.c.b16 %v1518, %v1515
  %v1630 = vpack.c.b16 %v1519, %v1516
  %v1631 = vpack.c.b16 %v1523, %v1520
  %v1632 = vpack.c.b16 %v1524, %v1521
  %v1633 = vpack.c.b16 %v1525, %v1522
  %v1634 = vpack.c.b16 %v1529, %v1526
  %v1635 = vpack.c.b16 %v1530, %v1527
  %v1636 = vpack.c.b16 %v1531, %v1528
  %v1637 = vpack.c.b16 %v1535, %v1532
  %v1638 = vpack.c.b16 %v1536, %v1533
  %v1639 = vpack.c.b16 %v1537, %v1534
  %v1640 = vpack.c.b16 %v1541, %v1538
  %v1641 = vpack.c.b16 %v1542, %v1539
  %v1642 = vpack.c.b16 %v1543, %v1540
  %v1643 = vpack.c.b16 %v1547, %v1544
  %v1644 = vpack.c.b16 %v1548, %v1545
  %v1645 = vpack.c.b16 %v1549, %v1546
  %v1646 = vpack.c.b16 %v1553, %v1550
  %v1647 = vpack.c.b16 %v1554, %v1551
  %v1648 = vpack.c.b16 %v1555, %v1552
  %v1649 = vpack.c.b16 %v1559, %v1556
  %v1650 = vpack.c.b16 %v1560, %v1557
  %v1651 = vpack.c.b16 %v1561, %v1558
  %v1652 = vpack.c.b16 %v1565, %v1562
  %v1653 = vpack.c.b16 %v1566, %v1563
  %v1654 = vpack.c.b16 %v1567, %v1564
  %v1655 = vpack.c.b16 %v1571, %v1568
  %v1656 = vpack.c.b16 %v1572, %v1569
  %v1657 = vpack.c.b16 %v1573, %v1570
  %v1658 = vpack.c.b16 %v1577, %v1574
  %v1659 = vpack.c.b16 %v1578, %v1575
  %v1660 = vpack.c.b16 %v1579, %v1576
  %v1661 = vpack.c.b16 %v1583, %v1580
  %v1662 = vpack.c.b16 %v1584, %v1581
  %v1663 = vpack.c.b16 %v1585, %v1582
  %v1664 = vpack.c.b16 %v1589, %v1586
  %v1665 = vpack.c.b16 %v1590, %v1587
  %v1666 = vpack.c.b16 %v1591, %v1588
  %v1667 = vpack.c.b16 %v1595, %v1592
  %v1668 = vpack.c.b16 %v1596, %v1593
  %v1669 = vpack.c.b16 %v1597, %v1594
  %1742 = vmatprep.subr.bf16.mxu0 %v1620
  %1743 = vmatpush1.bf16.msra.mxu0 %v1619
  %1744 = vmatprep.subr.bf16.mxu0 %v1617
  %1745 = vmatpush1.bf16.msra.mxu0 %v1616
  %1746 = vmatprep.subr.bf16.mxu0 %v1614
  %1747 = vmatpush1.bf16.msra.mxu0 %v1613
  %1748 = vmatprep.subr.bf16.mxu0 %v1611
  %1749 = vmatpush1.bf16.msra.mxu0 %v1610
  %1750 = vmatprep.subr.bf16.mxu0 %v1608
  %1751 = vmatpush1.bf16.msra.mxu0 %v1607
  %1752 = vmatprep.subr.bf16.mxu0 %v1605
  %1753 = vmatpush1.bf16.msra.mxu0 %v1604
  %1754 = vmatprep.subr.bf16.mxu0 %v1602
  %1755 = vmatpush1.bf16.msra.mxu0 %v1601
  %1756 = vmatprep.subr.bf16.mxu0 %v1599
  %1757 = vmatpush1.bf16.msra.mxu0 %v1598
  %1758 = vmatprep.subr.bf16.mxu0 %v1644
  %1759 = vmatpush2.bf16.msra.mxu0 %v1643
  %1760 = vmatprep.subr.bf16.mxu0 %v1641
  %1761 = vmatpush2.bf16.msra.mxu0 %v1640
  %1762 = vmatprep.subr.bf16.mxu0 %v1638
  %1763 = vmatpush2.bf16.msra.mxu0 %v1637
  %1764 = vmatprep.subr.bf16.mxu0 %v1635
  %1765 = vmatpush2.bf16.msra.mxu0 %v1634
  %1766 = vmatprep.subr.bf16.mxu0 %v1632
  %1767 = vmatpush2.bf16.msra.mxu0 %v1631
  %1768 = vmatprep.subr.bf16.mxu0 %v1629
  %1769 = vmatpush2.bf16.msra.mxu0 %v1628
  %1770 = vmatprep.subr.bf16.mxu0 %v1626
  %1771 = vmatpush2.bf16.msra.mxu0 %v1625
  %1772 = vmatprep.subr.bf16.mxu0 %v1623
  %1773 = vmatpush2.bf16.msra.mxu0 %v1622
  %1774 = vmatprep.mubr.bf16.mxu0 %v1251
  %1775 = vmatmul.mubr.bf16.gmra.mxu0 %v1250
  %v1776 = vpop.f32.mrf.mxu0
  %v1777 = vadd.f32 0.0, %v1776
  %v1778 = vpop.f32.mrf.mxu0
  %v1779 = vadd.f32 0.0, %v1778
  %v1780 = vpop.f32.mrf.mxu0
  %v1781 = vadd.f32 0.0, %v1780
  %v1782 = vpop.f32.mrf.mxu0
  %v1783 = vadd.f32 0.0, %v1782
  %1784 = vmatprep.mubr.bf16.mxu0 %v1254
  %1785 = vmatmul.mubr.bf16.gmra.mxu0 %v1253
  %v1786 = vpop.f32.mrf.mxu0
  %v1787 = vadd.f32 0.0, %v1786
  %v1788 = vpop.f32.mrf.mxu0
  %v1789 = vadd.f32 0.0, %v1788
  %v1790 = vpop.f32.mrf.mxu0
  %v1791 = vadd.f32 0.0, %v1790
  %v1792 = vpop.f32.mrf.mxu0
  %v1793 = vadd.f32 0.0, %v1792
  %1794 = vmatprep.mubr.bf16.mxu0 %v1257
  %1795 = vmatmul.mubr.bf16.gmra.mxu0 %v1256
  %v1796 = vpop.f32.mrf.mxu0
  %v1797 = vadd.f32 0.0, %v1796
  %v1798 = vpop.f32.mrf.mxu0
  %v1799 = vadd.f32 0.0, %v1798
  %v1800 = vpop.f32.mrf.mxu0
  %v1801 = vadd.f32 0.0, %v1800
  %v1802 = vpop.f32.mrf.mxu0
  %v1803 = vadd.f32 0.0, %v1802
  %1804 = vmatprep.mubr.bf16.mxu0 %v1260
  %1805 = vmatmul.mubr.bf16.gmra.mxu0 %v1259
  %v1806 = vpop.f32.mrf.mxu0
  %v1807 = vadd.f32 0.0, %v1806
  %v1808 = vpop.f32.mrf.mxu0
  %v1809 = vadd.f32 0.0, %v1808
  %v1810 = vpop.f32.mrf.mxu0
  %v1811 = vpop.f32.mrf.mxu0
  %1812 = vdwg.mxu0
  %1813 = vmatprep.subr.bf16.mxu0 %v1668
  %1814 = vmatpush1.bf16.msra.mxu0 %v1667
  %1815 = vmatprep.subr.bf16.mxu0 %v1665
  %1816 = vmatpush1.bf16.msra.mxu0 %v1664
  %1817 = vmatprep.subr.bf16.mxu0 %v1662
  %1818 = vmatpush1.bf16.msra.mxu0 %v1661
  %1819 = vmatprep.subr.bf16.mxu0 %v1659
  %1820 = vmatpush1.bf16.msra.mxu0 %v1658
  %1821 = vmatprep.subr.bf16.mxu0 %v1656
  %1822 = vmatpush1.bf16.msra.mxu0 %v1655
  %1823 = vmatprep.subr.bf16.mxu0 %v1653
  %1824 = vmatpush1.bf16.msra.mxu0 %v1652
  %1825 = vmatprep.subr.bf16.mxu0 %v1650
  %1826 = vmatpush1.bf16.msra.mxu0 %v1649
  %1827 = vmatprep.subr.bf16.mxu0 %v1647
  %1828 = vmatpush1.bf16.msra.mxu0 %v1646
  %1829 = vmatprep.subr.bf16.mxu0 0
  %1830 = vmatpush2.bf16.msra.mxu0 0
  %1831 = vmatprep.subr.bf16.mxu0 0
  %1832 = vmatpush2.bf16.msra.mxu0 0
  %1833 = vmatprep.subr.bf16.mxu0 0
  %1834 = vmatpush2.bf16.msra.mxu0 0
  %1835 = vmatprep.subr.bf16.mxu0 0
  %1836 = vmatpush2.bf16.msra.mxu0 0
  %1837 = vmatprep.subr.bf16.mxu0 0
  %1838 = vmatpush2.bf16.msra.mxu0 0
  %1839 = vmatprep.subr.bf16.mxu0 0
  %1840 = vmatpush2.bf16.msra.mxu0 0
  %1841 = vmatprep.subr.bf16.mxu0 0
  %1842 = vmatpush2.bf16.msra.mxu0 0
  %1843 = vmatprep.subr.bf16.mxu0 0
  %1844 = vmatpush2.bf16.msra.mxu0 0
  %1845 = vmatprep.mubr.bf16.mxu0 0
  %1846 = vmatmul.mubr.bf16.gmra.mxu0 %v1252
  %v1847 = vpop.f32.mrf.mxu0
  %v1848 = vadd.f32 %v1777, %v1847
  %v1849 = vpop.f32.mrf.mxu0
  %v1850 = vadd.f32 %v1779, %v1849
  %v1851 = vpop.f32.mrf.mxu0
  %v1852 = vadd.f32 %v1781, %v1851
  %v1853 = vpop.f32.mrf.mxu0
  %v1854 = vadd.f32 %v1783, %v1853
  %1855 = vmatprep.mubr.bf16.mxu0 0
  %1856 = vmatmul.mubr.bf16.gmra.mxu0 %v1255
  %v1857 = vpop.f32.mrf.mxu0
  %v1858 = vadd.f32 %v1787, %v1857
  %v1859 = vpop.f32.mrf.mxu0
  %v1860 = vadd.f32 %v1789, %v1859
  %v1861 = vpop.f32.mrf.mxu0
  %v1862 = vadd.f32 %v1791, %v1861
  %v1863 = vpop.f32.mrf.mxu0
  %v1864 = vadd.f32 %v1793, %v1863
  %1865 = vmatprep.mubr.bf16.mxu0 0
  %1866 = vmatmul.mubr.bf16.gmra.mxu0 %v1258
  %v1867 = vpop.f32.mrf.mxu0
  %v1868 = vadd.f32 %v1797, %v1867
  %v1869 = vpop.f32.mrf.mxu0
  %v1870 = vadd.f32 %v1799, %v1869
  %v1871 = vpop.f32.mrf.mxu0
  %v1872 = vadd.f32 %v1801, %v1871
  %v1873 = vpop.f32.mrf.mxu0
  %v1874 = vadd.f32 %v1803, %v1873
  %1875 = vmatprep.mubr.bf16.mxu0 0
  %1876 = vmatmul.mubr.bf16.gmra.mxu0 %v1261
  %v1877 = vpop.f32.mrf.mxu0
  %v1878 = vadd.f32 %v1807, %v1877
  %v1879 = vpop.f32.mrf.mxu0
  %v1880 = vadd.f32 %v1809, %v1879
  %v1881 = vpop.f32.mrf.mxu0
  %v1882 = vpop.f32.mrf.mxu0
  %1883 = vdwg.mxu0
  %1884 = vmatprep.subr.bf16.mxu0 0
  %1885 = vmatpush1.bf16.msra.mxu0 %v1621
  %1886 = vmatprep.subr.bf16.mxu0 0
  %1887 = vmatpush1.bf16.msra.mxu0 %v1618
  %1888 = vmatprep.subr.bf16.mxu0 0
  %1889 = vmatpush1.bf16.msra.mxu0 %v1615
  %1890 = vmatprep.subr.bf16.mxu0 0
  %1891 = vmatpush1.bf16.msra.mxu0 %v1612
  %1892 = vmatprep.subr.bf16.mxu0 0
  %1893 = vmatpush1.bf16.msra.mxu0 %v1609
  %1894 = vmatprep.subr.bf16.mxu0 0
  %1895 = vmatpush1.bf16.msra.mxu0 %v1606
  %1896 = vmatprep.subr.bf16.mxu0 0
  %1897 = vmatpush1.bf16.msra.mxu0 %v1603
  %1898 = vmatprep.subr.bf16.mxu0 0
  %1899 = vmatpush1.bf16.msra.mxu0 %v1600
  %1900 = vmatprep.subr.bf16.mxu0 0
  %1901 = vmatpush2.bf16.msra.mxu0 %v1645
  %1902 = vmatprep.subr.bf16.mxu0 0
  %1903 = vmatpush2.bf16.msra.mxu0 %v1642
  %1904 = vmatprep.subr.bf16.mxu0 0
  %1905 = vmatpush2.bf16.msra.mxu0 %v1639
  %1906 = vmatprep.subr.bf16.mxu0 0
  %1907 = vmatpush2.bf16.msra.mxu0 %v1636
  %1908 = vmatprep.subr.bf16.mxu0 0
  %1909 = vmatpush2.bf16.msra.mxu0 %v1633
  %1910 = vmatprep.subr.bf16.mxu0 0
  %1911 = vmatpush2.bf16.msra.mxu0 %v1630
  %1912 = vmatprep.subr.bf16.mxu0 0
  %1913 = vmatpush2.bf16.msra.mxu0 %v1627
  %1914 = vmatprep.subr.bf16.mxu0 0
  %1915 = vmatpush2.bf16.msra.mxu0 %v1624
  %1916 = vmatprep.mubr.bf16.mxu0 %v1251
  %1917 = vmatmul.mubr.bf16.gmra.mxu0 %v1250
  %v1918 = vpop.f32.mrf.mxu0
  %v1919 = vadd.f32 0.0, %v1918
  %v1920 = vpop.f32.mrf.mxu0
  %v1921 = vpop.f32.mrf.mxu0
  %v1922 = vadd.f32 0.0, %v1921
  %v1923 = vpop.f32.mrf.mxu0
  %1924 = vmatprep.mubr.bf16.mxu0 %v1254
  %1925 = vmatmul.mubr.bf16.gmra.mxu0 %v1253
  %v1926 = vpop.f32.mrf.mxu0
  %v1927 = vadd.f32 0.0, %v1926
  %v1928 = vpop.f32.mrf.mxu0
  %v1929 = vpop.f32.mrf.mxu0
  %v1930 = vadd.f32 0.0, %v1929
  %v1931 = vpop.f32.mrf.mxu0
  %1932 = vmatprep.mubr.bf16.mxu0 %v1257
  %1933 = vmatmul.mubr.bf16.gmra.mxu0 %v1256
  %v1934 = vpop.f32.mrf.mxu0
  %v1935 = vadd.f32 0.0, %v1934
  %v1936 = vpop.f32.mrf.mxu0
  %v1937 = vpop.f32.mrf.mxu0
  %v1938 = vadd.f32 0.0, %v1937
  %v1939 = vpop.f32.mrf.mxu0
  %1940 = vmatprep.mubr.bf16.mxu0 %v1260
  %1941 = vmatmul.mubr.bf16.gmra.mxu0 %v1259
  %v1942 = vpop.f32.mrf.mxu0
  %v1943 = vadd.f32 0.0, %v1942
  %v1944 = vpop.f32.mrf.mxu0
  %v1945 = vpop.f32.mrf.mxu0
  %v1946 = vpop.f32.mrf.mxu0
  %1947 = vdwg.mxu0
  %1948 = vmatprep.subr.bf16.mxu0 0
  %1949 = vmatpush1.bf16.msra.mxu0 %v1669
  %1950 = vmatprep.subr.bf16.mxu0 0
  %1951 = vmatpush1.bf16.msra.mxu0 %v1666
  %1952 = vmatprep.subr.bf16.mxu0 0
  %1953 = vmatpush1.bf16.msra.mxu0 %v1663
  %1954 = vmatprep.subr.bf16.mxu0 0
  %1955 = vmatpush1.bf16.msra.mxu0 %v1660
  %1956 = vmatprep.subr.bf16.mxu0 0
  %1957 = vmatpush1.bf16.msra.mxu0 %v1657
  %1958 = vmatprep.subr.bf16.mxu0 0
  %1959 = vmatpush1.bf16.msra.mxu0 %v1654
  %1960 = vmatprep.subr.bf16.mxu0 0
  %1961 = vmatpush1.bf16.msra.mxu0 %v1651
  %1962 = vmatprep.subr.bf16.mxu0 0
  %1963 = vmatpush1.bf16.msra.mxu0 %v1648
  %1964 = vmatprep.subr.bf16.mxu0 0
  %1965 = vmatpush2.bf16.msra.mxu0 0
  %1966 = vmatprep.subr.bf16.mxu0 0
  %1967 = vmatpush2.bf16.msra.mxu0 0
  %1968 = vmatprep.subr.bf16.mxu0 0
  %1969 = vmatpush2.bf16.msra.mxu0 0
  %1970 = vmatprep.subr.bf16.mxu0 0
  %1971 = vmatpush2.bf16.msra.mxu0 0
  %1972 = vmatprep.subr.bf16.mxu0 0
  %1973 = vmatpush2.bf16.msra.mxu0 0
  %1974 = vmatprep.subr.bf16.mxu0 0
  %1975 = vmatpush2.bf16.msra.mxu0 0
  %1976 = vmatprep.subr.bf16.mxu0 0
  %1977 = vmatpush2.bf16.msra.mxu0 0
  %1978 = vmatprep.subr.bf16.mxu0 0
  %1979 = vmatpush2.bf16.msra.mxu0 0
  %1980 = vmatprep.mubr.bf16.mxu0 0
  %1981 = vmatmul.mubr.bf16.gmra.mxu0 %v1252
  %v1982 = vpop.f32.mrf.mxu0
  %v1983 = vadd.f32 %v1919, %v1982
  %v1984 = vpop.f32.mrf.mxu0
  %v1985 = vpop.f32.mrf.mxu0
  %v1986 = vadd.f32 %v1922, %v1985
  %v1987 = vpop.f32.mrf.mxu0
  %1988 = vmatprep.mubr.bf16.mxu0 0
  %1989 = vmatmul.mubr.bf16.gmra.mxu0 %v1255
  %v1990 = vpop.f32.mrf.mxu0
  %v1991 = vadd.f32 %v1927, %v1990
  %v1992 = vpop.f32.mrf.mxu0
  %v1993 = vpop.f32.mrf.mxu0
  %v1994 = vadd.f32 %v1930, %v1993
  %v1995 = vpop.f32.mrf.mxu0
  %1996 = vmatprep.mubr.bf16.mxu0 0
  %1997 = vmatmul.mubr.bf16.gmra.mxu0 %v1258
  %v1998 = vpop.f32.mrf.mxu0
  %v1999 = vadd.f32 %v1935, %v1998
  %v2000 = vpop.f32.mrf.mxu0
  %v2001 = vpop.f32.mrf.mxu0
  %v2002 = vadd.f32 %v1938, %v2001
  %v2003 = vpop.f32.mrf.mxu0
  %2004 = vmatprep.mubr.bf16.mxu0 0
  %2005 = vmatmul.mubr.bf16.gmra.mxu0 %v1261
  %v2006 = vpop.f32.mrf.mxu0
  %v2007 = vadd.f32 %v1943, %v2006
  %v2008 = vpop.f32.mrf.mxu0
  %v2009 = vpop.f32.mrf.mxu0
  %v2010 = vpop.f32.mrf.mxu0
  %2011 = vdwg.mxu0
  %2012 = vst [vmem:[%s5] sm:$0xff] %v1848
  %2013 = vst [vmem:[%s5 + $0x8] sm:$0xff] %v1850
  %2014 = vst [vmem:[%s5 + $0x10] sm:$0xff] %v1983
  %2015 = vst [vmem:[%s5 + $0x18] sm:$0xff] %v1852
  %2016 = vst [vmem:[%s5 + $0x20] sm:$0xff] %v1854
  %2017 = vst [vmem:[%s5 + $0x28] sm:$0xff] %v1986
  %2018 = vst [vmem:[%s5 + $0x30] sm:$0xff] %v1858
  %2019 = vst [vmem:[%s5 + $0x38] sm:$0xff] %v1860
  %2020 = vst [vmem:[%s5 + $0x40] sm:$0xff] %v1991
  %2021 = vst [vmem:[%s5 + $0x48] sm:$0xff] %v1862
  %2022 = vst [vmem:[%s5 + $0x50] sm:$0xff] %v1864
  %2023 = vst [vmem:[%s5 + $0x58] sm:$0xff] %v1994
  %2024 = vst [vmem:[%s5 + $0x60] sm:$0xff] %v1868
  %2025 = vst [vmem:[%s5 + $0x68] sm:$0xff] %v1870
  %2026 = vst [vmem:[%s5 + $0x70] sm:$0xff] %v1999
  %2027 = vst [vmem:[%s5 + $0x78] sm:$0xff] %v1872
  %2028 = vst [vmem:[%s5 + $0x80] sm:$0xff] %v1874
  %2029 = vst [vmem:[%s5 + $0x88] sm:$0xff] %v2002
  %2030 = vst [vmem:[%s5 + $0x90] sm:$0xff] %v1878
  %2031 = vst [vmem:[%s5 + $0x98] sm:$0xff] %v1880
  %2032 = vst [vmem:[%s5 + $0xa0] sm:$0xff] %v2007
  // Predicated region
  $region52: #{fused_forward.1} parent=0 // pred_check
    _
  $region53: #{fused_forward.1} parent=0 // pred_check_branch
    %2034 = sbr.rel (0) target = $region55
  $region54: #{fused_forward.1} parent=0 // pred_region
    _
  $region55: #{fused_forward.1} parent=0 // pred_fallthru
    _
  // Predicated region
  $region56: #{fused_forward.1} parent=0 // pred_check
    _
  $region57: #{fused_forward.1} parent=0 // pred_check_branch
    %2036 = sbr.rel (0) target = $region59
  $region58: #{fused_forward.1} parent=0 // pred_region
    _
  $region59: #{fused_forward.1} parent=0 // pred_fallthru
    _
  %2037 = vsyncmov [#allocation3]
  %s2038 = vpop.sfrf %2037
  %p2039 = scmp.eq.s32.totalorder %s2038, 0
  %p2040 = pneg %p2039
  %2042 = shalt.err (%p2040)

</llo_original>
